<compile_context>
chip_gen: v6e
topology: v6e:2x2x1
jax: 0.10.0
libtpu: 0.0.40
codegen_flags: <defaults>
</compile_context>

<pallas_src>
import jax
import jax.numpy as jnp
from jax.experimental import pallas as pl
from jax.experimental.pallas import tpu as pltpu


def _round_up(x: int, m: int) -> int:
    return ((x + m - 1) // m) * m


def _cdiv(a: int, b: int) -> int:
    return -(-a // b)


def _balanced_tiles(n_min: int, tile_max: int, align: int):
    """Split n_min into num equal aligned tiles with tile ~<= tile_max (min padding)."""
    tile_max = max(align, tile_max)
    num = _cdiv(n_min, tile_max)
    tile = _round_up(_cdiv(n_min, num), align)
    return tile, num


def _device_kind() -> str:
    try:
        return jax.devices()[0].device_kind.lower()
    except Exception:  # pragma: no cover - no device at trace time
        return ""


def _make_auc_kernel(n_chunks: int, tn_chunk: int, use_mxu_reduce: bool):
    def kernel(pos_ref, p_col_ref, p_row_ref, out_ref, acc_ref):
        j = pl.program_id(1)

        # Zero this row-tile's resident per-row accumulator on its first col-tile.
        @pl.when(j == 0)
        def _init():
            acc_ref[...] = jnp.zeros_like(acc_ref)

        pc = p_col_ref[...]                                   # (TM, 1) f32 predictions

        if use_mxu_reduce:
            # Hoisted constants (JAX does not CSE broadcasts inside loops).
            ones = jnp.ones((tn_chunk, 128), jnp.bfloat16)
            one, half, zero = jnp.bfloat16(1.0), jnp.bfloat16(0.5), jnp.bfloat16(0.0)
        else:
            one, half, zero = jnp.float32(1.0), jnp.float32(0.5), jnp.float32(0.0)

        # Statically unrolled chunk loop over the TN axis: big grid steps
        # (overhead amortized) with only (TM, TN_CHUNK)-sized live temporaries.
        for c in range(n_chunks):
            pr = p_row_ref[:, c * tn_chunk:(c + 1) * tn_chunk]   # (1, TC) static view
            # Negative mask / padding were folded into pr (+inf columns -> 0).
            # Compares stay f32 (exact tie semantics); only the {0, 0.5, 1}
            # select payload is bf16 on the MXU path (exact values).
            ranked = jnp.where(pc > pr, one, jnp.where(pc == pr, half, zero))
            if use_mxu_reduce:
                # Row reduction on the otherwise-idle MXU (v6e/v7x); every
                # column of rs equals the row sum, f32 accumulation.
                rs = jnp.dot(ranked, ones, preferred_element_type=jnp.float32)  # (TM, 128)
            else:
                rs = jnp.sum(ranked, axis=-1, keepdims=True)                    # (TM, 1)
            acc_ref[...] = acc_ref[...] + rs

        # Pos-weighted per-row partials written once per row tile.
        @pl.when(j == pl.num_programs(1) - 1)
        def _finalize():
            out_ref[...] = pos_ref[...] * acc_ref[:, 0:1]

    return kernel


def auc_loss(y_pred: jax.Array, y_true: jax.Array, *, tm: int = 512, tn: int = 8192,
             tn_chunk: int = 512, use_mxu_reduce: bool | None = None) -> jax.Array:
    """Returns 1 - AUC as a float32 scalar (matches AUCLoss.forward).

    Precondition (same as roc_auc_score / the original module): the batch must
    contain at least one positive and one negative label, otherwise NaN.
    """
    n = y_pred.shape[0]
    p = y_pred.astype(jnp.float32)
    t = y_true.astype(jnp.float32)

    kind = _device_kind()
    is_v7x = ("v7" in kind) or ("7x" in kind)
    if use_mxu_reduce is None:
        # MXU ones-matmul reduce only pays off on v6e/v7x; v5e/older keep the
        # f32 VPU/XLU lane reduce.
        use_mxu_reduce = ("v6" in kind) or is_v7x

    # ---- tile geometry (aligned, minimal padding) ---------------------------
    tn_chunk = max(128, (min(tn_chunk, tn, _round_up(n, 128)) // 128) * 128)
    n_cols_min = _round_up(n, tn_chunk)
    tn, grid_j = _balanced_tiles(n_cols_min, tn, tn_chunk)
    n_cols = grid_j * tn
    n_chunks = tn // tn_chunk

    n_rows_min = _round_up(n, 8)
    tm, grid_i = _balanced_tiles(n_rows_min, tm, 8)
    if is_v7x and grid_i > 1 and grid_i % 2:
        # Even row-tile count -> balanced 2-TensorCore split under CORE_PARALLEL.
        grid_i += 1
        tm = _round_up(_cdiv(n_rows_min, grid_i), 8)
    n_rows = grid_i * tm

    # ---- padded / mask-folded operands (O(N), done once in the wrapper) -----
    pos_col = jnp.pad((t > 0.5).astype(jnp.float32), (0, n_rows - n)).reshape(n_rows, 1)
    p_col = jnp.pad(p, (0, n_rows - n)).reshape(n_rows, 1)
    # Fold negative mask and column padding into the predictions: positive /
    # padded columns become +inf, so pc > pr and pc == pr are both False there.
    p_row = jnp.where(t > 0.5, jnp.inf, p)
    p_row = jnp.pad(p_row, (0, n_cols - n), constant_values=jnp.inf).reshape(1, n_cols)

    row_sem = pltpu.CORE_PARALLEL if (is_v7x and grid_i >= 2) else pltpu.PARALLEL
    acc_shape = (tm, 128) if use_mxu_reduce else (tm, 1)
    kernel = _make_auc_kernel(n_chunks, tn_chunk, use_mxu_reduce)

    partials = pl.pallas_call(
        kernel,
        out_shape=jax.ShapeDtypeStruct((n_rows, 1), jnp.float32),
        grid=(grid_i, grid_j),
        in_specs=[
            pl.BlockSpec((tm, 1), lambda i, j: (i, 0)),    # positive mask
            pl.BlockSpec((tm, 1), lambda i, j: (i, 0)),    # predictions (rows)
            pl.BlockSpec((1, tn), lambda i, j: (0, j)),    # predictions (cols, neg-folded)
        ],
        out_specs=pl.BlockSpec((tm, 1), lambda i, j: (i, 0)),
        scratch_shapes=[pltpu.VMEM(acc_shape, jnp.float32)],
        compiler_params=pltpu.CompilerParams(
            dimension_semantics=(row_sem, pltpu.ARBITRARY),
            # Chunked temporaries keep the footprint small; stay conservative on
            # v7x's 64 MiB VMEM, give headroom on v5e/v6e's 128 MiB.
            vmem_limit_bytes=(32 if is_v7x else 64) * 1024 * 1024,
        ),
        cost_estimate=pl.CostEstimate(
            flops=6 * n_rows * n_cols,
            transcendentals=0,
            bytes_accessed=4 * (2 * n_rows * grid_j + n_cols * grid_i + n_rows),
        ),
    )(pos_col, p_col, p_row)

    u = jnp.sum(partials)                        # per-row partials -> good f32 accumulation
    n_pos = jnp.sum(t > 0.5).astype(jnp.float32)
    n_neg = jnp.float32(n) - n_pos
    # TODO(synk): n_pos == 0 or n_neg == 0 yields NaN (roc_auc_score's undefined
    # case; sklearn raises) - add a guard if callers can hit it.
    return (1.0 - u / (n_pos * n_neg)).astype(jnp.float32)


def _auc_loss_ref(y_pred, y_true):
    """Pure-JAX reference (same Mann-Whitney formulation as roc_auc_score)."""
    p = y_pred.astype(jnp.float32)
    t = y_true.astype(jnp.float32)
    pos = (t > 0.5).astype(jnp.float32)
    neg = (t <= 0.5).astype(jnp.float32)
    rank = (p[:, None] > p[None, :]).astype(jnp.float32) + 0.5 * (
        p[:, None] == p[None, :]
    ).astype(jnp.float32)
    u = jnp.sum(pos[:, None] * neg[None, :] * rank)
    return 1.0 - u / (jnp.sum(pos) * jnp.sum(neg))


if __name__ == "__main__":
    N = 600  # non-multiple of tile sizes -> exercises padding + multi-tile grid
    key = jax.random.PRNGKey(0)
    k_pred, k_true = jax.random.split(key)

    y_pred = jax.random.uniform(k_pred, (N,), dtype=jnp.float32)
    y_true = jax.random.bernoulli(k_true, p=0.4, shape=(N,)).astype(jnp.float32)

    ref = _auc_loss_ref(y_pred, y_true)

    # Production-default config (auto-picks reduce variant / core semantics).
    loss_default = auc_loss(y_pred, y_true)
    # Small tiles: multi-row/col grid steps + in-kernel chunk loop + padding,
    # run once per reduce variant so both kernel paths are validated.
    loss_vpu = auc_loss(y_pred, y_true, tm=128, tn=256, tn_chunk=128, use_mxu_reduce=False)
    loss_mxu = auc_loss(y_pred, y_true, tm=128, tn=256, tn_chunk=128, use_mxu_reduce=True)
    jax.block_until_ready((loss_default, loss_vpu, loss_mxu))

    for name, val in (("default", loss_default), ("vpu", loss_vpu), ("mxu", loss_mxu)):
        assert jnp.allclose(val, ref, atol=1e-5), (name, val, ref)

    print("KERNEL_OK")
</pallas_src>

<mosaic_0001>
module attributes {stable_mosaic.version = 11 : i64} {
  func.func @kernel(%arg0: i32, %arg1: i32, %arg2: memref<304x1xf32, #tpu.memory_space<vmem>>, %arg3: memref<304x1xf32, #tpu.memory_space<vmem>>, %arg4: memref<1x1024xf32, #tpu.memory_space<vmem>>, %arg5: memref<304x1xf32, #tpu.memory_space<vmem>>, %arg6: memref<304x1xf32, #tpu.memory_space<vmem>>) attributes {dimension_semantics = [#tpu.dimension_semantics<parallel>, #tpu.dimension_semantics<arbitrary>], iteration_bounds = array<i64: 2, 1>, scalar_prefetch = 0 : i64, scratch_operands = 1 : i64, tpu.core_type = #tpu.core_type<tc>, window_params = [{transform_indices = @transform_0, window_bounds = array<i64: 304, 1>}, {transform_indices = @transform_1, window_bounds = array<i64: 304, 1>}, {transform_indices = @transform_2, window_bounds = array<i64: 1, 1024>}, {transform_indices = @transform_3, window_bounds = array<i64: 304, 1>}]} {
    %c0_i32 = arith.constant 0 : i32
    %0 = arith.cmpi eq, %arg1, %c0_i32 : i32
    %1 = arith.extui %0 : i1 to i32
    %c0_i32_0 = arith.constant 0 : i32
    %2 = arith.cmpi ne, %1, %c0_i32_0 : i32
    scf.if %2 {
      %cst_22 = arith.constant 0.000000e+00 : f32
      %41 = vector.broadcast %cst_22 : f32 to vector<304x1xf32>
      %c0_23 = arith.constant 0 : index
      %c0_24 = arith.constant 0 : index
      %42 = vector.load %arg6[%c0_23, %c0_24] : memref<304x1xf32, #tpu.memory_space<vmem>>, vector<304x1xf32>
      tpu.vector_store %arg6[%c0_23, %c0_24], %41 {strides = array<i32>} : memref<304x1xf32, #tpu.memory_space<vmem>>, vector<304x1xf32>,
    } else {
    }
    %c0 = arith.constant 0 : index
    %c0_1 = arith.constant 0 : index
    %3 = vector.load %arg3[%c0, %c0_1] : memref<304x1xf32, #tpu.memory_space<vmem>>, vector<304x1xf32>
    %c0_2 = arith.constant 0 : index
    %c0_3 = arith.constant 0 : index
    %4 = vector.load %arg4[%c0_2, %c0_3] : memref<1x1024xf32, #tpu.memory_space<vmem>>, vector<1x512xf32>
    %5 = vector.broadcast %3 : vector<304x1xf32> to vector<304x512xf32>
    %6 = vector.broadcast %4 : vector<1x512xf32> to vector<304x512xf32>
    %7 = arith.cmpf ogt, %5, %6 : vector<304x512xf32>
    %8 = vector.broadcast %3 : vector<304x1xf32> to vector<304x512xf32>
    %9 = vector.broadcast %4 : vector<1x512xf32> to vector<304x512xf32>
    %10 = arith.cmpf oeq, %8, %9 : vector<304x512xf32>
    %cst = arith.constant 5.000000e-01 : f32
    %cst_4 = arith.constant 0.000000e+00 : f32
    %11 = vector.broadcast %cst : f32 to vector<304x512xf32>
    %12 = vector.broadcast %cst_4 : f32 to vector<304x512xf32>
    %13 = arith.select %10, %11, %12 : vector<304x512xi1>, vector<304x512xf32>
    %cst_5 = arith.constant 1.000000e+00 : f32
    %14 = vector.broadcast %cst_5 : f32 to vector<304x512xf32>
    %15 = arith.select %7, %14, %13 : vector<304x512xi1>, vector<304x512xf32>
    %cst_6 = arith.constant dense<0.000000e+00> : vector<304xf32>
    %16 = vector.multi_reduction <add>, %15, %cst_6 [1] : vector<304x512xf32> to vector<304xf32>
    %17 = vector.shape_cast %16 : vector<304xf32> to vector<304x1xf32>
    %c0_7 = arith.constant 0 : index
    %c0_8 = arith.constant 0 : index
    %18 = vector.load %arg6[%c0_7, %c0_8] : memref<304x1xf32, #tpu.memory_space<vmem>>, vector<304x1xf32>
    %19 = arith.addf %18, %17 : vector<304x1xf32>
    %c0_9 = arith.constant 0 : index
    %c0_10 = arith.constant 0 : index
    %20 = vector.load %arg6[%c0_9, %c0_10] : memref<304x1xf32, #tpu.memory_space<vmem>>, vector<304x1xf32>
    tpu.vector_store %arg6[%c0_9, %c0_10], %19 {strides = array<i32>} : memref<304x1xf32, #tpu.memory_space<vmem>>, vector<304x1xf32>,
    %c0_11 = arith.constant 0 : index
    %c512 = arith.constant 512 : index
    %21 = vector.load %arg4[%c0_11, %c512] : memref<1x1024xf32, #tpu.memory_space<vmem>>, vector<1x512xf32>
    %22 = vector.broadcast %3 : vector<304x1xf32> to vector<304x512xf32>
    %23 = vector.broadcast %21 : vector<1x512xf32> to vector<304x512xf32>
    %24 = arith.cmpf ogt, %22, %23 : vector<304x512xf32>
    %25 = vector.broadcast %3 : vector<304x1xf32> to vector<304x512xf32>
    %26 = vector.broadcast %21 : vector<1x512xf32> to vector<304x512xf32>
    %27 = arith.cmpf oeq, %25, %26 : vector<304x512xf32>
    %cst_12 = arith.constant 5.000000e-01 : f32
    %cst_13 = arith.constant 0.000000e+00 : f32
    %28 = vector.broadcast %cst_12 : f32 to vector<304x512xf32>
    %29 = vector.broadcast %cst_13 : f32 to vector<304x512xf32>
    %30 = arith.select %27, %28, %29 : vector<304x512xi1>, vector<304x512xf32>
    %cst_14 = arith.constant 1.000000e+00 : f32
    %31 = vector.broadcast %cst_14 : f32 to vector<304x512xf32>
    %32 = arith.select %24, %31, %30 : vector<304x512xi1>, vector<304x512xf32>
    %cst_15 = arith.constant dense<0.000000e+00> : vector<304xf32>
    %33 = vector.multi_reduction <add>, %32, %cst_15 [1] : vector<304x512xf32> to vector<304xf32>
    %34 = vector.shape_cast %33 : vector<304xf32> to vector<304x1xf32>
    %c0_16 = arith.constant 0 : index
    %c0_17 = arith.constant 0 : index
    %35 = vector.load %arg6[%c0_16, %c0_17] : memref<304x1xf32, #tpu.memory_space<vmem>>, vector<304x1xf32>
    %36 = arith.addf %35, %34 : vector<304x1xf32>
    %c0_18 = arith.constant 0 : index
    %c0_19 = arith.constant 0 : index
    %37 = vector.load %arg6[%c0_18, %c0_19] : memref<304x1xf32, #tpu.memory_space<vmem>>, vector<304x1xf32>
    tpu.vector_store %arg6[%c0_18, %c0_19], %36 {strides = array<i32>} : memref<304x1xf32, #tpu.memory_space<vmem>>, vector<304x1xf32>,
    %c0_i32_20 = arith.constant 0 : i32
    %38 = arith.cmpi eq, %arg1, %c0_i32_20 : i32
    %39 = arith.extui %38 : i1 to i32
    %c0_i32_21 = arith.constant 0 : i32
    %40 = arith.cmpi ne, %39, %c0_i32_21 : i32
    scf.if %40 {
      %c0_22 = arith.constant 0 : index
      %c0_23 = arith.constant 0 : index
      %41 = vector.load %arg2[%c0_22, %c0_23] : memref<304x1xf32, #tpu.memory_space<vmem>>, vector<304x1xf32>
      %c0_24 = arith.constant 0 : index
      %c0_25 = arith.constant 0 : index
      %42 = vector.load %arg6[%c0_24, %c0_25] : memref<304x1xf32, #tpu.memory_space<vmem>>, vector<304x1xf32>
      %43 = arith.mulf %41, %42 : vector<304x1xf32>
      %c0_26 = arith.constant 0 : index
      %c0_27 = arith.constant 0 : index
      %44 = vector.load %arg5[%c0_26, %c0_27] : memref<304x1xf32, #tpu.memory_space<vmem>>, vector<304x1xf32>
      tpu.vector_store %arg5[%c0_26, %c0_27], %43 {strides = array<i32>} : memref<304x1xf32, #tpu.memory_space<vmem>>, vector<304x1xf32>,
    } else {
    }
    return
  }
  func.func @transform_0(%arg0: i32, %arg1: i32) -> (i32, i32) {
    %c0_i32 = arith.constant 0 : i32
    %c0_i32_0 = arith.constant 0 : i32
    return %arg0, %c0_i32 : i32, i32
  }
  func.func @transform_1(%arg0: i32, %arg1: i32) -> (i32, i32) {
    %c0_i32 = arith.constant 0 : i32
    %c0_i32_0 = arith.constant 0 : i32
    return %arg0, %c0_i32 : i32, i32
  }
  func.func @transform_2(%arg0: i32, %arg1: i32) -> (i32, i32) {
    %c0_i32 = arith.constant 0 : i32
    %c0_i32_0 = arith.constant 0 : i32
    return %c0_i32, %arg1 : i32, i32
  }
  func.func @transform_3(%arg0: i32, %arg1: i32) -> (i32, i32) {
    %c0_i32 = arith.constant 0 : i32
    %c0_i32_0 = arith.constant 0 : i32
    return %arg0, %c0_i32 : i32, i32
  }
}

</mosaic_0001>

<llo_original>
// kernel: tpu_custom_call.1
$region0: #{tpu_custom_call.1}
  #allocation0 [shape = 'u32[]', space=smem, size = 0x4, offset = 0x4, fixed_abs, tag = 'smem constant byte address 0x4 - core index']
  #allocation1 [shape = 'u32[144,128]{1,0:T(1,128)}', space=vmem, size = 0x12000, scoped, tag = 'internal scratch']
  #allocation2 [shape = 'f32[304,1]{1,0:T(8,128)}', space=vmem, size = 0x26000, scoped, tag = 'scratch operand']
  %s0 = inlined_call_operand.vmem [shape: f32[608,1], index: 0, kind: input, shape index: {}]
  %s1 = inlined_call_operand.vmem [shape: f32[608,1], index: 1, kind: input, shape index: {}]
  %s2 = inlined_call_operand.vmem [shape: f32[1,1024], index: 2, kind: input, shape index: {}]
  %s3 = inlined_call_operand.vmem [shape: f32[608,1], index: 3, kind: output, shape index: {}]
  %s4 = sld [smem:[#allocation0]]
  $region53: #{tpu_custom_call.1} parent=0
    _
  %s6 = ssub.s32 1, %s4
  %s7 = scalar_select 0, %s6, %s4
  loop: start=0, step=1, limit=4
  $region2: #{tpu_custom_call.1} parent=0 // loop_pre_header
    _
  $region3: #{tpu_custom_call.1} parent=0 // loop_header
    %s9 = sphi 0, %s13
    %p10 = scmp.ge.s32.totalorder %s9, 4
    %s16 = sphi 0, %s28
    %s17 = sphi 0, %s24
    %s18 = sphi 0, %s16
    %s19 = sphi 0, %s17
    %s20 = sphi 0, %s18
    %s21 = sphi 0, %s19
    %s31 = sphi 0, %s33
    %s34 = sphi 0, %s31
    %s35 = sphi 0, %s34
    %s51 = sphi 0, %s35
    %s57 = sphi 0, %s59
    %s60 = sphi 0, %s57
    %s61 = sphi 0, %s60
    %s77 = sphi 0, %s61
    %s83 = sphi 0, %s85
    %s86 = sphi 0, %s83
    %s87 = sphi 0, %s86
    %s103 = sphi 0, %s87
    %s109 = sphi 0, %s111
    %s112 = sphi 0, %s109
    %s113 = sphi 0, %s112
    %s129 = sphi 0, %s113
  $region4: #{tpu_custom_call.1} parent=0 // loop_header_branch
    %12 = sbr.rel (%p10) target = $region8
  $region5: #{tpu_custom_call.1} parent=0 // loop_body
    %s14 = ssub.s32 %s9, 1
    %s15 = ssub.s32 %s9, 2
    %s22 = sadd.s32 1, %s17
    %p23 = scmp.ge.s32.totalorder %s22, 1
    %s24 = scalar_select %p23, 0, %s22
    %s25 = sadd.s32 1, %s16
    %s26 = scalar_select %p23, %s25, %s16
    %p27 = scmp.ge.s32.totalorder %s26, 2
    %s28 = scalar_select %p27, 0, %s26
    %s29 = ssub.s32 %s16, %s28
    %p30 = scmp.eq.s32.totalorder %s29, 0
    %s32 = sadd.s32 %s31, 1
    %s33 = scalar_select %p30, %s31, %s32
    %p36 = pneg %p30
    %p37 = scmp.eq.s32.totalorder %s9, 1
    %p38 = por %p36, %p37
    %p39 = scmp.ne.s32.totalorder %s31, %s34
    %p40 = scmp.eq.s32.totalorder %s9, 0
    %p41 = por %p39, %p40
    %p42 = scmp.ne.s32.totalorder %s31, %s34
    %p43 = scmp.eq.s32.totalorder %s14, 1
    %p44 = por %p42, %p43
    %p45 = scmp.ne.s32.totalorder %s34, %s35
    %p46 = scmp.eq.s32.totalorder %s14, 0
    %p47 = por %p45, %p46
    %p48 = scmp.ne.s32.totalorder %s34, %s35
    %p49 = scmp.eq.s32.totalorder %s15, 1
    %p50 = por %p48, %p49
    %p52 = scmp.ne.s32.totalorder %s35, %s51
    %p53 = scmp.eq.s32.totalorder %s15, 0
    %p54 = por %p52, %p53
    %s55 = ssub.s32 %s16, %s28
    %p56 = scmp.eq.s32.totalorder %s55, 0
    %s58 = sadd.s32 %s57, 1
    %s59 = scalar_select %p56, %s57, %s58
    %p62 = pneg %p56
    %p63 = scmp.eq.s32.totalorder %s9, 1
    %p64 = por %p62, %p63
    %p65 = scmp.ne.s32.totalorder %s57, %s60
    %p66 = scmp.eq.s32.totalorder %s9, 0
    %p67 = por %p65, %p66
    %p68 = scmp.ne.s32.totalorder %s57, %s60
    %p69 = scmp.eq.s32.totalorder %s14, 1
    %p70 = por %p68, %p69
    %p71 = scmp.ne.s32.totalorder %s60, %s61
    %p72 = scmp.eq.s32.totalorder %s14, 0
    %p73 = por %p71, %p72
    %p74 = scmp.ne.s32.totalorder %s60, %s61
    %p75 = scmp.eq.s32.totalorder %s15, 1
    %p76 = por %p74, %p75
    %p78 = scmp.ne.s32.totalorder %s61, %s77
    %p79 = scmp.eq.s32.totalorder %s15, 0
    %p80 = por %p78, %p79
    %s81 = ssub.s32 %s17, %s24
    %p82 = scmp.eq.s32.totalorder %s81, 0
    %s84 = sadd.s32 %s83, 1
    %s85 = scalar_select %p82, %s83, %s84
    %p88 = pneg %p82
    %p89 = scmp.eq.s32.totalorder %s9, 1
    %p90 = por %p88, %p89
    %p91 = scmp.ne.s32.totalorder %s83, %s86
    %p92 = scmp.eq.s32.totalorder %s9, 0
    %p93 = por %p91, %p92
    %p94 = scmp.ne.s32.totalorder %s83, %s86
    %p95 = scmp.eq.s32.totalorder %s14, 1
    %p96 = por %p94, %p95
    %p97 = scmp.ne.s32.totalorder %s86, %s87
    %p98 = scmp.eq.s32.totalorder %s14, 0
    %p99 = por %p97, %p98
    %p100 = scmp.ne.s32.totalorder %s86, %s87
    %p101 = scmp.eq.s32.totalorder %s15, 1
    %p102 = por %p100, %p101
    %p104 = scmp.ne.s32.totalorder %s87, %s103
    %p105 = scmp.eq.s32.totalorder %s15, 0
    %p106 = por %p104, %p105
    %s107 = ssub.s32 %s16, %s28
    %p108 = scmp.eq.s32.totalorder %s107, 0
    %s110 = sadd.s32 %s109, 1
    %s111 = scalar_select %p108, %s109, %s110
    %p114 = pneg %p108
    %p115 = scmp.eq.s32.totalorder %s9, 1
    %p116 = por %p114, %p115
    %p117 = scmp.ne.s32.totalorder %s109, %s112
    %p118 = scmp.eq.s32.totalorder %s9, 0
    %p119 = por %p117, %p118
    %p120 = scmp.ne.s32.totalorder %s109, %s112
    %p121 = scmp.eq.s32.totalorder %s14, 1
    %p122 = por %p120, %p121
    %p123 = scmp.ne.s32.totalorder %s112, %s113
    %p124 = scmp.eq.s32.totalorder %s14, 0
    %p125 = por %p123, %p124
    %p126 = scmp.ne.s32.totalorder %s112, %s113
    %p127 = scmp.eq.s32.totalorder %s15, 1
    %p128 = por %p126, %p127
    %p130 = scmp.ne.s32.totalorder %s113, %s129
    %p131 = scmp.eq.s32.totalorder %s15, 0
    %p132 = por %p130, %p131
    %p133 = scmp.le.s32.totalorder 1, %s9
    %p134 = scmp.lt.s32.totalorder %s9, 3
    %p135 = pnand %p133, %p134
    %p136 = pneg %p135
    // Predicated region
    $region9: #{tpu_custom_call.1} parent=5 // pred_check
      _
    $region10: #{tpu_custom_call.1} parent=5 // pred_check_branch
      %138 = sbr.rel (%p135) target = $region12
    $region11: #{tpu_custom_call.1} parent=5 // pred_region
      %s139 = ssub.s32 %s9, 1
      // Predicated region
      $region13: #{tpu_custom_call.1} parent=11 // pred_check
        %p140 = pneg %p99
      $region14: #{tpu_custom_call.1} parent=11 // pred_check_branch
        %142 = sbr.rel (%p140) target = $region16
      $region15: #{tpu_custom_call.1} parent=11 // pred_region
        %s143 = smul.u32 8, %s19
        %p144 = scmp.lt.s32.totalorder %s143, 7
        %s145 = scalar_select %p144, %s143, 7
        %s146 = scalar_lea.vmem %s2, %s145
        %s147 = smul.u32 8, %s19
      $region16: #{tpu_custom_call.1} parent=11 // pred_fallthru
        _
    $region12: #{tpu_custom_call.1} parent=5 // pred_fallthru
      _
    %p148 = scmp.lt.s32.totalorder %s9, 2
    // Predicated region
    $region17: #{tpu_custom_call.1} parent=5 // pred_check
      %p149 = pneg %p148
    $region18: #{tpu_custom_call.1} parent=5 // pred_check_branch
      %151 = sbr.rel (%p149) target = $region20
    $region19: #{tpu_custom_call.1} parent=5 // pred_region
      // Predicated region
      $region21: #{tpu_custom_call.1} parent=19 // pred_check
        %p152 = pneg %p41
      $region22: #{tpu_custom_call.1} parent=19 // pred_check_branch
        %154 = sbr.rel (%p152) target = $region24
      $region23: #{tpu_custom_call.1} parent=19 // pred_region
        %s155 = smul.u32 38, %s16
        %p156 = scmp.lt.s32.totalorder %s155, 75
        %s157 = scalar_select %p156, %s155, 75
        %s158 = smul.addr %s157, 8
        %s159 = scalar_lea.vmem %s0, %s158
        %s160 = smul.u32 38, %s16
      $region24: #{tpu_custom_call.1} parent=19 // pred_fallthru
        _
      // Predicated region
      $region25: #{tpu_custom_call.1} parent=19 // pred_check
        %p161 = pneg %p67
      $region26: #{tpu_custom_call.1} parent=19 // pred_check_branch
        %163 = sbr.rel (%p161) target = $region28
      $region27: #{tpu_custom_call.1} parent=19 // pred_region
        %s164 = smul.u32 38, %s16
        %p165 = scmp.lt.s32.totalorder %s164, 75
        %s166 = scalar_select %p165, %s164, 75
        %s167 = smul.addr %s166, 8
        %s168 = scalar_lea.vmem %s1, %s167
        %s169 = smul.u32 38, %s16
      $region28: #{tpu_custom_call.1} parent=19 // pred_fallthru
        _
    $region20: #{tpu_custom_call.1} parent=5 // pred_fallthru
      _
    %p170 = scmp.le.s32.totalorder 1, %s9
    %p171 = scmp.lt.s32.totalorder %s9, 3
    %p172 = pnand %p170, %p171
    %p173 = pneg %p172
    // Predicated region
    $region29: #{tpu_custom_call.1} parent=5 // pred_check
      _
    $region30: #{tpu_custom_call.1} parent=5 // pred_check_branch
      %175 = sbr.rel (%p172) target = $region32
    $region31: #{tpu_custom_call.1} parent=5 // pred_region
      %s176 = ssub.s32 %s9, 1
      %s177 = smul.u32 38, %s18
      %p178 = scmp.lt.s32.totalorder %s177, 75
      %s179 = scalar_select %p178, %s177, 75
      %s180 = smul.addr %s179, 8
      %s181 = scalar_lea.vmem %s0, %s180
      %p182 = pneg %p47
      %p183 = pneg %p44
      %s184 = smul.u32 38, %s18
      %p185 = scmp.lt.s32.totalorder %s184, 75
      %s186 = scalar_select %p185, %s184, 75
      %s187 = smul.addr %s186, 8
      %s188 = scalar_lea.vmem %s1, %s187
      %p189 = pneg %p73
      %p190 = pneg %p70
      %s191 = smul.u32 8, %s19
      %p192 = scmp.lt.s32.totalorder %s191, 7
      %s193 = scalar_select %p192, %s191, 7
      %s194 = scalar_lea.vmem %s2, %s193
      %p195 = pneg %p99
      %p196 = pneg %p96
      %p197 = pneg %p125
      %p198 = pneg %p122
      %s199 = smul.u32 38, %s18
      %p200 = scmp.lt.s32.totalorder %s199, 75
      %s201 = scalar_select %p200, %s199, 75
      %s202 = smul.addr %s201, 8
      %s203 = scalar_lea.vmem %s3, %s202
      %s204 = smul.u32 38, %s18
      %p205 = scmp.lt.s32.totalorder %s204, 75
      %s206 = scalar_select %p205, %s204, 75
      %s207 = smul.addr %s206, 8
      %s208 = scalar_lea.vmem %s0, %s207
      %s209 = smul.u32 38, %s18
      %s210 = smul.u32 38, %s18
      %p211 = scmp.lt.s32.totalorder %s210, 75
      %s212 = scalar_select %p211, %s210, 75
      %s213 = smul.addr %s212, 8
      %s214 = scalar_lea.vmem %s1, %s213
      %s215 = smul.u32 38, %s18
      %s216 = smul.u32 8, %s19
      %p217 = scmp.lt.s32.totalorder %s216, 7
      %s218 = scalar_select %p217, %s216, 7
      %s219 = scalar_lea.vmem %s2, %s218
      %s220 = smul.u32 8, %s19
      %s221 = smul.u32 38, %s18
      %p222 = scmp.lt.s32.totalorder %s221, 75
      %s223 = scalar_select %p222, %s221, 75
      %s224 = smul.addr %s223, 8
      %s225 = scalar_lea.vmem %s3, %s224
      %s226 = smul.u32 38, %s18
      %p227 = scmp.eq.s32.totalorder %s19, 0
      // Predicated region
      $region33: #{tpu_custom_call.1} parent=31 // pred_check
        %p228 = pneg %p227
      $region34: #{tpu_custom_call.1} parent=31 // pred_check_branch
        %230 = sbr.rel (%p228) target = $region36
      $region35: #{tpu_custom_call.1} parent=31 // pred_region
        %vm231 = vcmask 7168
        %232 = vst.msk [vmem:[#allocation2] sm:$0xff] %vm231, 0.0
        %233 = vst.msk [vmem:[#allocation2 + $0x8] sm:$0xff] %vm231, 0.0
        %234 = vst.msk [vmem:[#allocation2 + $0x10] sm:$0xff] %vm231, 0.0
        %235 = vst.msk [vmem:[#allocation2 + $0x18] sm:$0xff] %vm231, 0.0
        %236 = vst.msk [vmem:[#allocation2 + $0x20] sm:$0xff] %vm231, 0.0
        %237 = vst.msk [vmem:[#allocation2 + $0x28] sm:$0xff] %vm231, 0.0
        %238 = vst.msk [vmem:[#allocation2 + $0x30] sm:$0xff] %vm231, 0.0
        %239 = vst.msk [vmem:[#allocation2 + $0x38] sm:$0xff] %vm231, 0.0
        %240 = vst.msk [vmem:[#allocation2 + $0x40] sm:$0xff] %vm231, 0.0
        %241 = vst.msk [vmem:[#allocation2 + $0x48] sm:$0xff] %vm231, 0.0
        %242 = vst.msk [vmem:[#allocation2 + $0x50] sm:$0xff] %vm231, 0.0
        %243 = vst.msk [vmem:[#allocation2 + $0x58] sm:$0xff] %vm231, 0.0
        %244 = vst.msk [vmem:[#allocation2 + $0x60] sm:$0xff] %vm231, 0.0
        %245 = vst.msk [vmem:[#allocation2 + $0x68] sm:$0xff] %vm231, 0.0
        %246 = vst.msk [vmem:[#allocation2 + $0x70] sm:$0xff] %vm231, 0.0
        %247 = vst.msk [vmem:[#allocation2 + $0x78] sm:$0xff] %vm231, 0.0
        %248 = vst.msk [vmem:[#allocation2 + $0x80] sm:$0xff] %vm231, 0.0
        %249 = vst.msk [vmem:[#allocation2 + $0x88] sm:$0xff] %vm231, 0.0
        %250 = vst.msk [vmem:[#allocation2 + $0x90] sm:$0xff] %vm231, 0.0
        %251 = vst.msk [vmem:[#allocation2 + $0x98] sm:$0xff] %vm231, 0.0
        %252 = vst.msk [vmem:[#allocation2 + $0xa0] sm:$0xff] %vm231, 0.0
        %253 = vst.msk [vmem:[#allocation2 + $0xa8] sm:$0xff] %vm231, 0.0
        %254 = vst.msk [vmem:[#allocation2 + $0xb0] sm:$0xff] %vm231, 0.0
        %255 = vst.msk [vmem:[#allocation2 + $0xb8] sm:$0xff] %vm231, 0.0
        %256 = vst.msk [vmem:[#allocation2 + $0xc0] sm:$0xff] %vm231, 0.0
        %257 = vst.msk [vmem:[#allocation2 + $0xc8] sm:$0xff] %vm231, 0.0
        %258 = vst.msk [vmem:[#allocation2 + $0xd0] sm:$0xff] %vm231, 0.0
        %259 = vst.msk [vmem:[#allocation2 + $0xd8] sm:$0xff] %vm231, 0.0
        %260 = vst.msk [vmem:[#allocation2 + $0xe0] sm:$0xff] %vm231, 0.0
        %261 = vst.msk [vmem:[#allocation2 + $0xe8] sm:$0xff] %vm231, 0.0
        %262 = vst.msk [vmem:[#allocation2 + $0xf0] sm:$0xff] %vm231, 0.0
        %263 = vst.msk [vmem:[#allocation2 + $0xf8] sm:$0xff] %vm231, 0.0
        %264 = vst.msk [vmem:[#allocation2 + $0x100] sm:$0xff] %vm231, 0.0
        %265 = vst.msk [vmem:[#allocation2 + $0x108] sm:$0xff] %vm231, 0.0
        %266 = vst.msk [vmem:[#allocation2 + $0x110] sm:$0xff] %vm231, 0.0
        %267 = vst.msk [vmem:[#allocation2 + $0x118] sm:$0xff] %vm231, 0.0
        %268 = vst.msk [vmem:[#allocation2 + $0x120] sm:$0xff] %vm231, 0.0
        %269 = vst.msk [vmem:[#allocation2 + $0x128] sm:$0xff] %vm231, 0.0
      $region36: #{tpu_custom_call.1} parent=31 // pred_fallthru
        _
      %v270 = vld [vmem:[%s214] sm:$0xff]
      %v271 = vld [vmem:[%s214 + $0x8] sm:$0xff]
      %v272 = vld [vmem:[%s214 + $0x10] sm:$0xff]
      %v273 = vld [vmem:[%s214 + $0x18] sm:$0xff]
      %v274 = vld [vmem:[%s214 + $0x20] sm:$0xff]
      %v275 = vld [vmem:[%s214 + $0x28] sm:$0xff]
      %v276 = vld [vmem:[%s214 + $0x30] sm:$0xff]
      %v277 = vld [vmem:[%s214 + $0x38] sm:$0xff]
      %v278 = vld [vmem:[%s214 + $0x40] sm:$0xff]
      %v279 = vld [vmem:[%s214 + $0x48] sm:$0xff]
      %v280 = vld [vmem:[%s214 + $0x50] sm:$0xff]
      %v281 = vld [vmem:[%s214 + $0x58] sm:$0xff]
      %v282 = vld [vmem:[%s214 + $0x60] sm:$0xff]
      %v283 = vld [vmem:[%s214 + $0x68] sm:$0xff]
      %v284 = vld [vmem:[%s214 + $0x70] sm:$0xff]
      %v285 = vld [vmem:[%s214 + $0x78] sm:$0xff]
      %v286 = vld [vmem:[%s214 + $0x80] sm:$0xff]
      %v287 = vld [vmem:[%s214 + $0x88] sm:$0xff]
      %v288 = vld [vmem:[%s214 + $0x90] sm:$0xff]
      %v289 = vld [vmem:[%s214 + $0x98] sm:$0xff]
      %v290 = vld [vmem:[%s214 + $0xa0] sm:$0xff]
      %v291 = vld [vmem:[%s214 + $0xa8] sm:$0xff]
      %v292 = vld [vmem:[%s214 + $0xb0] sm:$0xff]
      %v293 = vld [vmem:[%s214 + $0xb8] sm:$0xff]
      %v294 = vld [vmem:[%s214 + $0xc0] sm:$0xff]
      %v295 = vld [vmem:[%s214 + $0xc8] sm:$0xff]
      %v296 = vld [vmem:[%s214 + $0xd0] sm:$0xff]
      %v297 = vld [vmem:[%s214 + $0xd8] sm:$0xff]
      %v298 = vld [vmem:[%s214 + $0xe0] sm:$0xff]
      %v299 = vld [vmem:[%s214 + $0xe8] sm:$0xff]
      %v300 = vld [vmem:[%s214 + $0xf0] sm:$0xff]
      %v301 = vld [vmem:[%s214 + $0xf8] sm:$0xff]
      %v302 = vld [vmem:[%s214 + $0x100] sm:$0xff]
      %v303 = vld [vmem:[%s214 + $0x108] sm:$0xff]
      %v304 = vld [vmem:[%s214 + $0x110] sm:$0xff]
      %v305 = vld [vmem:[%s214 + $0x118] sm:$0xff]
      %v306 = vld [vmem:[%s214 + $0x120] sm:$0xff]
      %v307 = vld [vmem:[%s214 + $0x128] sm:$0xff]
      %v308 = vld [vmem:[%s219] sm:$0xf]
      %310 = vset.pattern.permute.xlu0 0
      %311 = vperm.xlu0 %310, %v270
      %v312 = vpop.permute.xlu0 %311
      %315 = vset.pattern.permute.xlu0 0
      %316 = vperm.xlu0 %315, %v271
      %v317 = vpop.permute.xlu0 %316
      %320 = vset.pattern.permute.xlu0 0
      %321 = vperm.xlu0 %320, %v272
      %v322 = vpop.permute.xlu0 %321
      %325 = vset.pattern.permute.xlu0 0
      %326 = vperm.xlu0 %325, %v273
      %v327 = vpop.permute.xlu0 %326
      %330 = vset.pattern.permute.xlu0 0
      %331 = vperm.xlu0 %330, %v274
      %v332 = vpop.permute.xlu0 %331
      %335 = vset.pattern.permute.xlu0 0
      %336 = vperm.xlu0 %335, %v275
      %v337 = vpop.permute.xlu0 %336
      %340 = vset.pattern.permute.xlu0 0
      %341 = vperm.xlu0 %340, %v276
      %v342 = vpop.permute.xlu0 %341
      %345 = vset.pattern.permute.xlu0 0
      %346 = vperm.xlu0 %345, %v277
      %v347 = vpop.permute.xlu0 %346
      %350 = vset.pattern.permute.xlu0 0
      %351 = vperm.xlu0 %350, %v278
      %v352 = vpop.permute.xlu0 %351
      %355 = vset.pattern.permute.xlu0 0
      %356 = vperm.xlu0 %355, %v279
      %v357 = vpop.permute.xlu0 %356
      %360 = vset.pattern.permute.xlu0 0
      %361 = vperm.xlu0 %360, %v280
      %v362 = vpop.permute.xlu0 %361
      %365 = vset.pattern.permute.xlu0 0
      %366 = vperm.xlu0 %365, %v281
      %v367 = vpop.permute.xlu0 %366
      %370 = vset.pattern.permute.xlu0 0
      %371 = vperm.xlu0 %370, %v282
      %v372 = vpop.permute.xlu0 %371
      %375 = vset.pattern.permute.xlu0 0
      %376 = vperm.xlu0 %375, %v283
      %v377 = vpop.permute.xlu0 %376
      %380 = vset.pattern.permute.xlu0 0
      %381 = vperm.xlu0 %380, %v284
      %v382 = vpop.permute.xlu0 %381
      %385 = vset.pattern.permute.xlu0 0
      %386 = vperm.xlu0 %385, %v285
      %v387 = vpop.permute.xlu0 %386
      %390 = vset.pattern.permute.xlu0 0
      %391 = vperm.xlu0 %390, %v286
      %v392 = vpop.permute.xlu0 %391
      %395 = vset.pattern.permute.xlu0 0
      %396 = vperm.xlu0 %395, %v287
      %v397 = vpop.permute.xlu0 %396
      %400 = vset.pattern.permute.xlu0 0
      %401 = vperm.xlu0 %400, %v288
      %v402 = vpop.permute.xlu0 %401
      %405 = vset.pattern.permute.xlu0 0
      %406 = vperm.xlu0 %405, %v289
      %v407 = vpop.permute.xlu0 %406
      %410 = vset.pattern.permute.xlu0 0
      %411 = vperm.xlu0 %410, %v290
      %v412 = vpop.permute.xlu0 %411
      %415 = vset.pattern.permute.xlu0 0
      %416 = vperm.xlu0 %415, %v291
      %v417 = vpop.permute.xlu0 %416
      %420 = vset.pattern.permute.xlu0 0
      %421 = vperm.xlu0 %420, %v292
      %v422 = vpop.permute.xlu0 %421
      %425 = vset.pattern.permute.xlu0 0
      %426 = vperm.xlu0 %425, %v293
      %v427 = vpop.permute.xlu0 %426
      %430 = vset.pattern.permute.xlu0 0
      %431 = vperm.xlu0 %430, %v294
      %v432 = vpop.permute.xlu0 %431
      %435 = vset.pattern.permute.xlu0 0
      %436 = vperm.xlu0 %435, %v295
      %v437 = vpop.permute.xlu0 %436
      %440 = vset.pattern.permute.xlu0 0
      %441 = vperm.xlu0 %440, %v296
      %v442 = vpop.permute.xlu0 %441
      %445 = vset.pattern.permute.xlu0 0
      %446 = vperm.xlu0 %445, %v297
      %v447 = vpop.permute.xlu0 %446
      %450 = vset.pattern.permute.xlu0 0
      %451 = vperm.xlu0 %450, %v298
      %v452 = vpop.permute.xlu0 %451
      %455 = vset.pattern.permute.xlu0 0
      %456 = vperm.xlu0 %455, %v299
      %v457 = vpop.permute.xlu0 %456
      %460 = vset.pattern.permute.xlu0 0
      %461 = vperm.xlu0 %460, %v300
      %v462 = vpop.permute.xlu0 %461
      %465 = vset.pattern.permute.xlu0 0
      %466 = vperm.xlu0 %465, %v301
      %v467 = vpop.permute.xlu0 %466
      %470 = vset.pattern.permute.xlu0 0
      %471 = vperm.xlu0 %470, %v302
      %v472 = vpop.permute.xlu0 %471
      %475 = vset.pattern.permute.xlu0 0
      %476 = vperm.xlu0 %475, %v303
      %v477 = vpop.permute.xlu0 %476
      %480 = vset.pattern.permute.xlu0 0
      %481 = vperm.xlu0 %480, %v304
      %v482 = vpop.permute.xlu0 %481
      %485 = vset.pattern.permute.xlu0 0
      %486 = vperm.xlu0 %485, %v305
      %v487 = vpop.permute.xlu0 %486
      %490 = vset.pattern.permute.xlu0 0
      %491 = vperm.xlu0 %490, %v306
      %v492 = vpop.permute.xlu0 %491
      %495 = vset.pattern.permute.xlu0 0
      %496 = vperm.xlu0 %495, %v307
      %v497 = vpop.permute.xlu0 %496
      %v500 = vlaneseq
      %v501 = vshrl.u32 %v500, 7
      %v502 = vsub.s32 0, %v501
      %v503 = vrot.slane %v308, %v502
      %v504 = vlaneseq
      %v505 = vshrl.u32 %v504, 7
      %v506 = vsub.s32 1, %v505
      %v507 = vrot.slane %v308, %v506
      %v508 = vlaneseq
      %v509 = vshrl.u32 %v508, 7
      %v510 = vsub.s32 2, %v509
      %v511 = vrot.slane %v308, %v510
      %v512 = vlaneseq
      %v513 = vshrl.u32 %v512, 7
      %v514 = vsub.s32 3, %v513
      %v515 = vrot.slane %v308, %v514
      %vm520 = vcmp.gt.f32.partialorder %v312, %v503
      %vm521 = vcmp.gt.f32.partialorder %v312, %v507
      %vm522 = vcmp.gt.f32.partialorder %v312, %v511
      %vm523 = vcmp.gt.f32.partialorder %v312, %v515
      %vm524 = vcmp.gt.f32.partialorder %v317, %v503
      %vm525 = vcmp.gt.f32.partialorder %v317, %v507
      %vm526 = vcmp.gt.f32.partialorder %v317, %v511
      %vm527 = vcmp.gt.f32.partialorder %v317, %v515
      %vm528 = vcmp.gt.f32.partialorder %v322, %v503
      %vm529 = vcmp.gt.f32.partialorder %v322, %v507
      %vm530 = vcmp.gt.f32.partialorder %v322, %v511
      %vm531 = vcmp.gt.f32.partialorder %v322, %v515
      %vm532 = vcmp.gt.f32.partialorder %v327, %v503
      %vm533 = vcmp.gt.f32.partialorder %v327, %v507
      %vm534 = vcmp.gt.f32.partialorder %v327, %v511
      %vm535 = vcmp.gt.f32.partialorder %v327, %v515
      %vm536 = vcmp.gt.f32.partialorder %v332, %v503
      %vm537 = vcmp.gt.f32.partialorder %v332, %v507
      %vm538 = vcmp.gt.f32.partialorder %v332, %v511
      %vm539 = vcmp.gt.f32.partialorder %v332, %v515
      %vm540 = vcmp.gt.f32.partialorder %v337, %v503
      %vm541 = vcmp.gt.f32.partialorder %v337, %v507
      %vm542 = vcmp.gt.f32.partialorder %v337, %v511
      %vm543 = vcmp.gt.f32.partialorder %v337, %v515
      %vm544 = vcmp.gt.f32.partialorder %v342, %v503
      %vm545 = vcmp.gt.f32.partialorder %v342, %v507
      %vm546 = vcmp.gt.f32.partialorder %v342, %v511
      %vm547 = vcmp.gt.f32.partialorder %v342, %v515
      %vm548 = vcmp.gt.f32.partialorder %v347, %v503
      %vm549 = vcmp.gt.f32.partialorder %v347, %v507
      %vm550 = vcmp.gt.f32.partialorder %v347, %v511
      %vm551 = vcmp.gt.f32.partialorder %v347, %v515
      %vm552 = vcmp.gt.f32.partialorder %v352, %v503
      %vm553 = vcmp.gt.f32.partialorder %v352, %v507
      %vm554 = vcmp.gt.f32.partialorder %v352, %v511
      %vm555 = vcmp.gt.f32.partialorder %v352, %v515
      %vm556 = vcmp.gt.f32.partialorder %v357, %v503
      %vm557 = vcmp.gt.f32.partialorder %v357, %v507
      %vm558 = vcmp.gt.f32.partialorder %v357, %v511
      %vm559 = vcmp.gt.f32.partialorder %v357, %v515
      %vm560 = vcmp.gt.f32.partialorder %v362, %v503
      %vm561 = vcmp.gt.f32.partialorder %v362, %v507
      %vm562 = vcmp.gt.f32.partialorder %v362, %v511
      %vm563 = vcmp.gt.f32.partialorder %v362, %v515
      %vm564 = vcmp.gt.f32.partialorder %v367, %v503
      %vm565 = vcmp.gt.f32.partialorder %v367, %v507
      %vm566 = vcmp.gt.f32.partialorder %v367, %v511
      %vm567 = vcmp.gt.f32.partialorder %v367, %v515
      %vm568 = vcmp.gt.f32.partialorder %v372, %v503
      %vm569 = vcmp.gt.f32.partialorder %v372, %v507
      %vm570 = vcmp.gt.f32.partialorder %v372, %v511
      %vm571 = vcmp.gt.f32.partialorder %v372, %v515
      %vm572 = vcmp.gt.f32.partialorder %v377, %v503
      %vm573 = vcmp.gt.f32.partialorder %v377, %v507
      %vm574 = vcmp.gt.f32.partialorder %v377, %v511
      %vm575 = vcmp.gt.f32.partialorder %v377, %v515
      %vm576 = vcmp.gt.f32.partialorder %v382, %v503
      %vm577 = vcmp.gt.f32.partialorder %v382, %v507
      %vm578 = vcmp.gt.f32.partialorder %v382, %v511
      %vm579 = vcmp.gt.f32.partialorder %v382, %v515
      %vm580 = vcmp.gt.f32.partialorder %v387, %v503
      %vm581 = vcmp.gt.f32.partialorder %v387, %v507
      %vm582 = vcmp.gt.f32.partialorder %v387, %v511
      %vm583 = vcmp.gt.f32.partialorder %v387, %v515
      %vm584 = vcmp.gt.f32.partialorder %v392, %v503
      %vm585 = vcmp.gt.f32.partialorder %v392, %v507
      %vm586 = vcmp.gt.f32.partialorder %v392, %v511
      %vm587 = vcmp.gt.f32.partialorder %v392, %v515
      %vm588 = vcmp.gt.f32.partialorder %v397, %v503
      %vm589 = vcmp.gt.f32.partialorder %v397, %v507
      %vm590 = vcmp.gt.f32.partialorder %v397, %v511
      %vm591 = vcmp.gt.f32.partialorder %v397, %v515
      %vm592 = vcmp.gt.f32.partialorder %v402, %v503
      %vm593 = vcmp.gt.f32.partialorder %v402, %v507
      %vm594 = vcmp.gt.f32.partialorder %v402, %v511
      %vm595 = vcmp.gt.f32.partialorder %v402, %v515
      %vm596 = vcmp.gt.f32.partialorder %v407, %v503
      %vm597 = vcmp.gt.f32.partialorder %v407, %v507
      %vm598 = vcmp.gt.f32.partialorder %v407, %v511
      %vm599 = vcmp.gt.f32.partialorder %v407, %v515
      %vm600 = vcmp.gt.f32.partialorder %v412, %v503
      %vm601 = vcmp.gt.f32.partialorder %v412, %v507
      %vm602 = vcmp.gt.f32.partialorder %v412, %v511
      %vm603 = vcmp.gt.f32.partialorder %v412, %v515
      %vm604 = vcmp.gt.f32.partialorder %v417, %v503
      %vm605 = vcmp.gt.f32.partialorder %v417, %v507
      %vm606 = vcmp.gt.f32.partialorder %v417, %v511
      %vm607 = vcmp.gt.f32.partialorder %v417, %v515
      %vm608 = vcmp.gt.f32.partialorder %v422, %v503
      %vm609 = vcmp.gt.f32.partialorder %v422, %v507
      %vm610 = vcmp.gt.f32.partialorder %v422, %v511
      %vm611 = vcmp.gt.f32.partialorder %v422, %v515
      %vm612 = vcmp.gt.f32.partialorder %v427, %v503
      %vm613 = vcmp.gt.f32.partialorder %v427, %v507
      %vm614 = vcmp.gt.f32.partialorder %v427, %v511
      %vm615 = vcmp.gt.f32.partialorder %v427, %v515
      %vm616 = vcmp.gt.f32.partialorder %v432, %v503
      %vm617 = vcmp.gt.f32.partialorder %v432, %v507
      %vm618 = vcmp.gt.f32.partialorder %v432, %v511
      %vm619 = vcmp.gt.f32.partialorder %v432, %v515
      %vm620 = vcmp.gt.f32.partialorder %v437, %v503
      %vm621 = vcmp.gt.f32.partialorder %v437, %v507
      %vm622 = vcmp.gt.f32.partialorder %v437, %v511
      %vm623 = vcmp.gt.f32.partialorder %v437, %v515
      %vm624 = vcmp.gt.f32.partialorder %v442, %v503
      %vm625 = vcmp.gt.f32.partialorder %v442, %v507
      %vm626 = vcmp.gt.f32.partialorder %v442, %v511
      %vm627 = vcmp.gt.f32.partialorder %v442, %v515
      %vm628 = vcmp.gt.f32.partialorder %v447, %v503
      %vm629 = vcmp.gt.f32.partialorder %v447, %v507
      %vm630 = vcmp.gt.f32.partialorder %v447, %v511
      %vm631 = vcmp.gt.f32.partialorder %v447, %v515
      %vm632 = vcmp.gt.f32.partialorder %v452, %v503
      %vm633 = vcmp.gt.f32.partialorder %v452, %v507
      %vm634 = vcmp.gt.f32.partialorder %v452, %v511
      %vm635 = vcmp.gt.f32.partialorder %v452, %v515
      %vm636 = vcmp.gt.f32.partialorder %v457, %v503
      %vm637 = vcmp.gt.f32.partialorder %v457, %v507
      %vm638 = vcmp.gt.f32.partialorder %v457, %v511
      %vm639 = vcmp.gt.f32.partialorder %v457, %v515
      %vm640 = vcmp.gt.f32.partialorder %v462, %v503
      %vm641 = vcmp.gt.f32.partialorder %v462, %v507
      %vm642 = vcmp.gt.f32.partialorder %v462, %v511
      %vm643 = vcmp.gt.f32.partialorder %v462, %v515
      %vm644 = vcmp.gt.f32.partialorder %v467, %v503
      %vm645 = vcmp.gt.f32.partialorder %v467, %v507
      %vm646 = vcmp.gt.f32.partialorder %v467, %v511
      %vm647 = vcmp.gt.f32.partialorder %v467, %v515
      %vm648 = vcmp.gt.f32.partialorder %v472, %v503
      %vm649 = vcmp.gt.f32.partialorder %v472, %v507
      %vm650 = vcmp.gt.f32.partialorder %v472, %v511
      %vm651 = vcmp.gt.f32.partialorder %v472, %v515
      %vm652 = vcmp.gt.f32.partialorder %v477, %v503
      %vm653 = vcmp.gt.f32.partialorder %v477, %v507
      %vm654 = vcmp.gt.f32.partialorder %v477, %v511
      %vm655 = vcmp.gt.f32.partialorder %v477, %v515
      %vm656 = vcmp.gt.f32.partialorder %v482, %v503
      %vm657 = vcmp.gt.f32.partialorder %v482, %v507
      %vm658 = vcmp.gt.f32.partialorder %v482, %v511
      %vm659 = vcmp.gt.f32.partialorder %v482, %v515
      %vm660 = vcmp.gt.f32.partialorder %v487, %v503
      %vm661 = vcmp.gt.f32.partialorder %v487, %v507
      %vm662 = vcmp.gt.f32.partialorder %v487, %v511
      %vm663 = vcmp.gt.f32.partialorder %v487, %v515
      %vm664 = vcmp.gt.f32.partialorder %v492, %v503
      %vm665 = vcmp.gt.f32.partialorder %v492, %v507
      %vm666 = vcmp.gt.f32.partialorder %v492, %v511
      %vm667 = vcmp.gt.f32.partialorder %v492, %v515
      %vm668 = vcmp.gt.f32.partialorder %v497, %v503
      %vm669 = vcmp.gt.f32.partialorder %v497, %v507
      %vm670 = vcmp.gt.f32.partialorder %v497, %v511
      %vm671 = vcmp.gt.f32.partialorder %v497, %v515
      %vm672 = vcmp.eq.f32.partialorder %v312, %v503
      %vm673 = vcmp.eq.f32.partialorder %v312, %v507
      %vm674 = vcmp.eq.f32.partialorder %v312, %v511
      %vm675 = vcmp.eq.f32.partialorder %v312, %v515
      %vm676 = vcmp.eq.f32.partialorder %v317, %v503
      %vm677 = vcmp.eq.f32.partialorder %v317, %v507
      %vm678 = vcmp.eq.f32.partialorder %v317, %v511
      %vm679 = vcmp.eq.f32.partialorder %v317, %v515
      %vm680 = vcmp.eq.f32.partialorder %v322, %v503
      %vm681 = vcmp.eq.f32.partialorder %v322, %v507
      %vm682 = vcmp.eq.f32.partialorder %v322, %v511
      %vm683 = vcmp.eq.f32.partialorder %v322, %v515
      %vm684 = vcmp.eq.f32.partialorder %v327, %v503
      %vm685 = vcmp.eq.f32.partialorder %v327, %v507
      %vm686 = vcmp.eq.f32.partialorder %v327, %v511
      %vm687 = vcmp.eq.f32.partialorder %v327, %v515
      %vm688 = vcmp.eq.f32.partialorder %v332, %v503
      %vm689 = vcmp.eq.f32.partialorder %v332, %v507
      %vm690 = vcmp.eq.f32.partialorder %v332, %v511
      %vm691 = vcmp.eq.f32.partialorder %v332, %v515
      %vm692 = vcmp.eq.f32.partialorder %v337, %v503
      %vm693 = vcmp.eq.f32.partialorder %v337, %v507
      %vm694 = vcmp.eq.f32.partialorder %v337, %v511
      %vm695 = vcmp.eq.f32.partialorder %v337, %v515
      %vm696 = vcmp.eq.f32.partialorder %v342, %v503
      %vm697 = vcmp.eq.f32.partialorder %v342, %v507
      %vm698 = vcmp.eq.f32.partialorder %v342, %v511
      %vm699 = vcmp.eq.f32.partialorder %v342, %v515
      %vm700 = vcmp.eq.f32.partialorder %v347, %v503
      %vm701 = vcmp.eq.f32.partialorder %v347, %v507
      %vm702 = vcmp.eq.f32.partialorder %v347, %v511
      %vm703 = vcmp.eq.f32.partialorder %v347, %v515
      %vm704 = vcmp.eq.f32.partialorder %v352, %v503
      %vm705 = vcmp.eq.f32.partialorder %v352, %v507
      %vm706 = vcmp.eq.f32.partialorder %v352, %v511
      %vm707 = vcmp.eq.f32.partialorder %v352, %v515
      %vm708 = vcmp.eq.f32.partialorder %v357, %v503
      %vm709 = vcmp.eq.f32.partialorder %v357, %v507
      %vm710 = vcmp.eq.f32.partialorder %v357, %v511
      %vm711 = vcmp.eq.f32.partialorder %v357, %v515
      %vm712 = vcmp.eq.f32.partialorder %v362, %v503
      %vm713 = vcmp.eq.f32.partialorder %v362, %v507
      %vm714 = vcmp.eq.f32.partialorder %v362, %v511
      %vm715 = vcmp.eq.f32.partialorder %v362, %v515
      %vm716 = vcmp.eq.f32.partialorder %v367, %v503
      %vm717 = vcmp.eq.f32.partialorder %v367, %v507
      %vm718 = vcmp.eq.f32.partialorder %v367, %v511
      %vm719 = vcmp.eq.f32.partialorder %v367, %v515
      %vm720 = vcmp.eq.f32.partialorder %v372, %v503
      %vm721 = vcmp.eq.f32.partialorder %v372, %v507
      %vm722 = vcmp.eq.f32.partialorder %v372, %v511
      %vm723 = vcmp.eq.f32.partialorder %v372, %v515
      %vm724 = vcmp.eq.f32.partialorder %v377, %v503
      %vm725 = vcmp.eq.f32.partialorder %v377, %v507
      %vm726 = vcmp.eq.f32.partialorder %v377, %v511
      %vm727 = vcmp.eq.f32.partialorder %v377, %v515
      %vm728 = vcmp.eq.f32.partialorder %v382, %v503
      %vm729 = vcmp.eq.f32.partialorder %v382, %v507
      %vm730 = vcmp.eq.f32.partialorder %v382, %v511
      %vm731 = vcmp.eq.f32.partialorder %v382, %v515
      %vm732 = vcmp.eq.f32.partialorder %v387, %v503
      %vm733 = vcmp.eq.f32.partialorder %v387, %v507
      %vm734 = vcmp.eq.f32.partialorder %v387, %v511
      %vm735 = vcmp.eq.f32.partialorder %v387, %v515
      %vm736 = vcmp.eq.f32.partialorder %v392, %v503
      %vm737 = vcmp.eq.f32.partialorder %v392, %v507
      %vm738 = vcmp.eq.f32.partialorder %v392, %v511
      %vm739 = vcmp.eq.f32.partialorder %v392, %v515
      %vm740 = vcmp.eq.f32.partialorder %v397, %v503
      %vm741 = vcmp.eq.f32.partialorder %v397, %v507
      %vm742 = vcmp.eq.f32.partialorder %v397, %v511
      %vm743 = vcmp.eq.f32.partialorder %v397, %v515
      %vm744 = vcmp.eq.f32.partialorder %v402, %v503
      %vm745 = vcmp.eq.f32.partialorder %v402, %v507
      %vm746 = vcmp.eq.f32.partialorder %v402, %v511
      %vm747 = vcmp.eq.f32.partialorder %v402, %v515
      %vm748 = vcmp.eq.f32.partialorder %v407, %v503
      %vm749 = vcmp.eq.f32.partialorder %v407, %v507
      %vm750 = vcmp.eq.f32.partialorder %v407, %v511
      %vm751 = vcmp.eq.f32.partialorder %v407, %v515
      %vm752 = vcmp.eq.f32.partialorder %v412, %v503
      %vm753 = vcmp.eq.f32.partialorder %v412, %v507
      %vm754 = vcmp.eq.f32.partialorder %v412, %v511
      %vm755 = vcmp.eq.f32.partialorder %v412, %v515
      %vm756 = vcmp.eq.f32.partialorder %v417, %v503
      %vm757 = vcmp.eq.f32.partialorder %v417, %v507
      %vm758 = vcmp.eq.f32.partialorder %v417, %v511
      %vm759 = vcmp.eq.f32.partialorder %v417, %v515
      %vm760 = vcmp.eq.f32.partialorder %v422, %v503
      %vm761 = vcmp.eq.f32.partialorder %v422, %v507
      %vm762 = vcmp.eq.f32.partialorder %v422, %v511
      %vm763 = vcmp.eq.f32.partialorder %v422, %v515
      %vm764 = vcmp.eq.f32.partialorder %v427, %v503
      %vm765 = vcmp.eq.f32.partialorder %v427, %v507
      %vm766 = vcmp.eq.f32.partialorder %v427, %v511
      %vm767 = vcmp.eq.f32.partialorder %v427, %v515
      %vm768 = vcmp.eq.f32.partialorder %v432, %v503
      %vm769 = vcmp.eq.f32.partialorder %v432, %v507
      %vm770 = vcmp.eq.f32.partialorder %v432, %v511
      %vm771 = vcmp.eq.f32.partialorder %v432, %v515
      %vm772 = vcmp.eq.f32.partialorder %v437, %v503
      %vm773 = vcmp.eq.f32.partialorder %v437, %v507
      %vm774 = vcmp.eq.f32.partialorder %v437, %v511
      %vm775 = vcmp.eq.f32.partialorder %v437, %v515
      %vm776 = vcmp.eq.f32.partialorder %v442, %v503
      %vm777 = vcmp.eq.f32.partialorder %v442, %v507
      %vm778 = vcmp.eq.f32.partialorder %v442, %v511
      %vm779 = vcmp.eq.f32.partialorder %v442, %v515
      %vm780 = vcmp.eq.f32.partialorder %v447, %v503
      %vm781 = vcmp.eq.f32.partialorder %v447, %v507
      %vm782 = vcmp.eq.f32.partialorder %v447, %v511
      %vm783 = vcmp.eq.f32.partialorder %v447, %v515
      %vm784 = vcmp.eq.f32.partialorder %v452, %v503
      %vm785 = vcmp.eq.f32.partialorder %v452, %v507
      %vm786 = vcmp.eq.f32.partialorder %v452, %v511
      %vm787 = vcmp.eq.f32.partialorder %v452, %v515
      %vm788 = vcmp.eq.f32.partialorder %v457, %v503
      %vm789 = vcmp.eq.f32.partialorder %v457, %v507
      %vm790 = vcmp.eq.f32.partialorder %v457, %v511
      %vm791 = vcmp.eq.f32.partialorder %v457, %v515
      %vm792 = vcmp.eq.f32.partialorder %v462, %v503
      %vm793 = vcmp.eq.f32.partialorder %v462, %v507
      %vm794 = vcmp.eq.f32.partialorder %v462, %v511
      %vm795 = vcmp.eq.f32.partialorder %v462, %v515
      %vm796 = vcmp.eq.f32.partialorder %v467, %v503
      %vm797 = vcmp.eq.f32.partialorder %v467, %v507
      %vm798 = vcmp.eq.f32.partialorder %v467, %v511
      %vm799 = vcmp.eq.f32.partialorder %v467, %v515
      %vm800 = vcmp.eq.f32.partialorder %v472, %v503
      %vm801 = vcmp.eq.f32.partialorder %v472, %v507
      %vm802 = vcmp.eq.f32.partialorder %v472, %v511
      %vm803 = vcmp.eq.f32.partialorder %v472, %v515
      %vm804 = vcmp.eq.f32.partialorder %v477, %v503
      %vm805 = vcmp.eq.f32.partialorder %v477, %v507
      %vm806 = vcmp.eq.f32.partialorder %v477, %v511
      %vm807 = vcmp.eq.f32.partialorder %v477, %v515
      %vm808 = vcmp.eq.f32.partialorder %v482, %v503
      %vm809 = vcmp.eq.f32.partialorder %v482, %v507
      %vm810 = vcmp.eq.f32.partialorder %v482, %v511
      %vm811 = vcmp.eq.f32.partialorder %v482, %v515
      %vm812 = vcmp.eq.f32.partialorder %v487, %v503
      %vm813 = vcmp.eq.f32.partialorder %v487, %v507
      %vm814 = vcmp.eq.f32.partialorder %v487, %v511
      %vm815 = vcmp.eq.f32.partialorder %v487, %v515
      %vm816 = vcmp.eq.f32.partialorder %v492, %v503
      %vm817 = vcmp.eq.f32.partialorder %v492, %v507
      %vm818 = vcmp.eq.f32.partialorder %v492, %v511
      %vm819 = vcmp.eq.f32.partialorder %v492, %v515
      %vm820 = vcmp.eq.f32.partialorder %v497, %v503
      %vm821 = vcmp.eq.f32.partialorder %v497, %v507
      %vm822 = vcmp.eq.f32.partialorder %v497, %v511
      %vm823 = vcmp.eq.f32.partialorder %v497, %v515
      %v824 = vsel %vm672, 0.5, 0.0
      %v825 = vsel %vm673, 0.5, 0.0
      %v826 = vsel %vm674, 0.5, 0.0
      %v827 = vsel %vm675, 0.5, 0.0
      %v828 = vsel %vm676, 0.5, 0.0
      %v829 = vsel %vm677, 0.5, 0.0
      %v830 = vsel %vm678, 0.5, 0.0
      %v831 = vsel %vm679, 0.5, 0.0
      %v832 = vsel %vm680, 0.5, 0.0
      %v833 = vsel %vm681, 0.5, 0.0
      %v834 = vsel %vm682, 0.5, 0.0
      %v835 = vsel %vm683, 0.5, 0.0
      %v836 = vsel %vm684, 0.5, 0.0
      %v837 = vsel %vm685, 0.5, 0.0
      %v838 = vsel %vm686, 0.5, 0.0
      %v839 = vsel %vm687, 0.5, 0.0
      %v840 = vsel %vm688, 0.5, 0.0
      %v841 = vsel %vm689, 0.5, 0.0
      %v842 = vsel %vm690, 0.5, 0.0
      %v843 = vsel %vm691, 0.5, 0.0
      %v844 = vsel %vm692, 0.5, 0.0
      %v845 = vsel %vm693, 0.5, 0.0
      %v846 = vsel %vm694, 0.5, 0.0
      %v847 = vsel %vm695, 0.5, 0.0
      %v848 = vsel %vm696, 0.5, 0.0
      %v849 = vsel %vm697, 0.5, 0.0
      %v850 = vsel %vm698, 0.5, 0.0
      %v851 = vsel %vm699, 0.5, 0.0
      %v852 = vsel %vm700, 0.5, 0.0
      %v853 = vsel %vm701, 0.5, 0.0
      %v854 = vsel %vm702, 0.5, 0.0
      %v855 = vsel %vm703, 0.5, 0.0
      %v856 = vsel %vm704, 0.5, 0.0
      %v857 = vsel %vm705, 0.5, 0.0
      %v858 = vsel %vm706, 0.5, 0.0
      %v859 = vsel %vm707, 0.5, 0.0
      %v860 = vsel %vm708, 0.5, 0.0
      %v861 = vsel %vm709, 0.5, 0.0
      %v862 = vsel %vm710, 0.5, 0.0
      %v863 = vsel %vm711, 0.5, 0.0
      %v864 = vsel %vm712, 0.5, 0.0
      %v865 = vsel %vm713, 0.5, 0.0
      %v866 = vsel %vm714, 0.5, 0.0
      %v867 = vsel %vm715, 0.5, 0.0
      %v868 = vsel %vm716, 0.5, 0.0
      %v869 = vsel %vm717, 0.5, 0.0
      %v870 = vsel %vm718, 0.5, 0.0
      %v871 = vsel %vm719, 0.5, 0.0
      %v872 = vsel %vm720, 0.5, 0.0
      %v873 = vsel %vm721, 0.5, 0.0
      %v874 = vsel %vm722, 0.5, 0.0
      %v875 = vsel %vm723, 0.5, 0.0
      %v876 = vsel %vm724, 0.5, 0.0
      %v877 = vsel %vm725, 0.5, 0.0
      %v878 = vsel %vm726, 0.5, 0.0
      %v879 = vsel %vm727, 0.5, 0.0
      %v880 = vsel %vm728, 0.5, 0.0
      %v881 = vsel %vm729, 0.5, 0.0
      %v882 = vsel %vm730, 0.5, 0.0
      %v883 = vsel %vm731, 0.5, 0.0
      %v884 = vsel %vm732, 0.5, 0.0
      %v885 = vsel %vm733, 0.5, 0.0
      %v886 = vsel %vm734, 0.5, 0.0
      %v887 = vsel %vm735, 0.5, 0.0
      %v888 = vsel %vm736, 0.5, 0.0
      %v889 = vsel %vm737, 0.5, 0.0
      %v890 = vsel %vm738, 0.5, 0.0
      %v891 = vsel %vm739, 0.5, 0.0
      %v892 = vsel %vm740, 0.5, 0.0
      %v893 = vsel %vm741, 0.5, 0.0
      %v894 = vsel %vm742, 0.5, 0.0
      %v895 = vsel %vm743, 0.5, 0.0
      %v896 = vsel %vm744, 0.5, 0.0
      %v897 = vsel %vm745, 0.5, 0.0
      %v898 = vsel %vm746, 0.5, 0.0
      %v899 = vsel %vm747, 0.5, 0.0
      %v900 = vsel %vm748, 0.5, 0.0
      %v901 = vsel %vm749, 0.5, 0.0
      %v902 = vsel %vm750, 0.5, 0.0
      %v903 = vsel %vm751, 0.5, 0.0
      %v904 = vsel %vm752, 0.5, 0.0
      %v905 = vsel %vm753, 0.5, 0.0
      %v906 = vsel %vm754, 0.5, 0.0
      %v907 = vsel %vm755, 0.5, 0.0
      %v908 = vsel %vm756, 0.5, 0.0
      %v909 = vsel %vm757, 0.5, 0.0
      %v910 = vsel %vm758, 0.5, 0.0
      %v911 = vsel %vm759, 0.5, 0.0
      %v912 = vsel %vm760, 0.5, 0.0
      %v913 = vsel %vm761, 0.5, 0.0
      %v914 = vsel %vm762, 0.5, 0.0
      %v915 = vsel %vm763, 0.5, 0.0
      %v916 = vsel %vm764, 0.5, 0.0
      %v917 = vsel %vm765, 0.5, 0.0
      %v918 = vsel %vm766, 0.5, 0.0
      %v919 = vsel %vm767, 0.5, 0.0
      %v920 = vsel %vm768, 0.5, 0.0
      %v921 = vsel %vm769, 0.5, 0.0
      %v922 = vsel %vm770, 0.5, 0.0
      %v923 = vsel %vm771, 0.5, 0.0
      %v924 = vsel %vm772, 0.5, 0.0
      %v925 = vsel %vm773, 0.5, 0.0
      %v926 = vsel %vm774, 0.5, 0.0
      %v927 = vsel %vm775, 0.5, 0.0
      %v928 = vsel %vm776, 0.5, 0.0
      %v929 = vsel %vm777, 0.5, 0.0
      %v930 = vsel %vm778, 0.5, 0.0
      %v931 = vsel %vm779, 0.5, 0.0
      %v932 = vsel %vm780, 0.5, 0.0
      %v933 = vsel %vm781, 0.5, 0.0
      %v934 = vsel %vm782, 0.5, 0.0
      %v935 = vsel %vm783, 0.5, 0.0
      %v936 = vsel %vm784, 0.5, 0.0
      %v937 = vsel %vm785, 0.5, 0.0
      %v938 = vsel %vm786, 0.5, 0.0
      %v939 = vsel %vm787, 0.5, 0.0
      %v940 = vsel %vm788, 0.5, 0.0
      %v941 = vsel %vm789, 0.5, 0.0
      %v942 = vsel %vm790, 0.5, 0.0
      %v943 = vsel %vm791, 0.5, 0.0
      %v944 = vsel %vm792, 0.5, 0.0
      %v945 = vsel %vm793, 0.5, 0.0
      %v946 = vsel %vm794, 0.5, 0.0
      %v947 = vsel %vm795, 0.5, 0.0
      %v948 = vsel %vm796, 0.5, 0.0
      %v949 = vsel %vm797, 0.5, 0.0
      %v950 = vsel %vm798, 0.5, 0.0
      %v951 = vsel %vm799, 0.5, 0.0
      %v952 = vsel %vm800, 0.5, 0.0
      %v953 = vsel %vm801, 0.5, 0.0
      %v954 = vsel %vm802, 0.5, 0.0
      %v955 = vsel %vm803, 0.5, 0.0
      %v956 = vsel %vm804, 0.5, 0.0
      %v957 = vsel %vm805, 0.5, 0.0
      %v958 = vsel %vm806, 0.5, 0.0
      %v959 = vsel %vm807, 0.5, 0.0
      %v960 = vsel %vm808, 0.5, 0.0
      %v961 = vsel %vm809, 0.5, 0.0
      %v962 = vsel %vm810, 0.5, 0.0
      %v963 = vsel %vm811, 0.5, 0.0
      %v964 = vsel %vm812, 0.5, 0.0
      %v965 = vsel %vm813, 0.5, 0.0
      %v966 = vsel %vm814, 0.5, 0.0
      %v967 = vsel %vm815, 0.5, 0.0
      %v968 = vsel %vm816, 0.5, 0.0
      %v969 = vsel %vm817, 0.5, 0.0
      %v970 = vsel %vm818, 0.5, 0.0
      %v971 = vsel %vm819, 0.5, 0.0
      %v972 = vsel %vm820, 0.5, 0.0
      %v973 = vsel %vm821, 0.5, 0.0
      %v974 = vsel %vm822, 0.5, 0.0
      %v975 = vsel %vm823, 0.5, 0.0
      %v976 = vsel %vm520, 1.0, %v824
      %v977 = vsel %vm521, 1.0, %v825
      %v978 = vsel %vm522, 1.0, %v826
      %v979 = vsel %vm523, 1.0, %v827
      %v980 = vsel %vm524, 1.0, %v828
      %v981 = vsel %vm525, 1.0, %v829
      %v982 = vsel %vm526, 1.0, %v830
      %v983 = vsel %vm527, 1.0, %v831
      %v984 = vsel %vm528, 1.0, %v832
      %v985 = vsel %vm529, 1.0, %v833
      %v986 = vsel %vm530, 1.0, %v834
      %v987 = vsel %vm531, 1.0, %v835
      %v988 = vsel %vm532, 1.0, %v836
      %v989 = vsel %vm533, 1.0, %v837
      %v990 = vsel %vm534, 1.0, %v838
      %v991 = vsel %vm535, 1.0, %v839
      %v992 = vsel %vm536, 1.0, %v840
      %v993 = vsel %vm537, 1.0, %v841
      %v994 = vsel %vm538, 1.0, %v842
      %v995 = vsel %vm539, 1.0, %v843
      %v996 = vsel %vm540, 1.0, %v844
      %v997 = vsel %vm541, 1.0, %v845
      %v998 = vsel %vm542, 1.0, %v846
      %v999 = vsel %vm543, 1.0, %v847
      %v1000 = vsel %vm544, 1.0, %v848
      %v1001 = vsel %vm545, 1.0, %v849
      %v1002 = vsel %vm546, 1.0, %v850
      %v1003 = vsel %vm547, 1.0, %v851
      %v1004 = vsel %vm548, 1.0, %v852
      %v1005 = vsel %vm549, 1.0, %v853
      %v1006 = vsel %vm550, 1.0, %v854
      %v1007 = vsel %vm551, 1.0, %v855
      %v1008 = vsel %vm552, 1.0, %v856
      %v1009 = vsel %vm553, 1.0, %v857
      %v1010 = vsel %vm554, 1.0, %v858
      %v1011 = vsel %vm555, 1.0, %v859
      %v1012 = vsel %vm556, 1.0, %v860
      %v1013 = vsel %vm557, 1.0, %v861
      %v1014 = vsel %vm558, 1.0, %v862
      %v1015 = vsel %vm559, 1.0, %v863
      %v1016 = vsel %vm560, 1.0, %v864
      %v1017 = vsel %vm561, 1.0, %v865
      %v1018 = vsel %vm562, 1.0, %v866
      %v1019 = vsel %vm563, 1.0, %v867
      %v1020 = vsel %vm564, 1.0, %v868
      %v1021 = vsel %vm565, 1.0, %v869
      %v1022 = vsel %vm566, 1.0, %v870
      %v1023 = vsel %vm567, 1.0, %v871
      %v1024 = vsel %vm568, 1.0, %v872
      %v1025 = vsel %vm569, 1.0, %v873
      %v1026 = vsel %vm570, 1.0, %v874
      %v1027 = vsel %vm571, 1.0, %v875
      %v1028 = vsel %vm572, 1.0, %v876
      %v1029 = vsel %vm573, 1.0, %v877
      %v1030 = vsel %vm574, 1.0, %v878
      %v1031 = vsel %vm575, 1.0, %v879
      %v1032 = vsel %vm576, 1.0, %v880
      %v1033 = vsel %vm577, 1.0, %v881
      %v1034 = vsel %vm578, 1.0, %v882
      %v1035 = vsel %vm579, 1.0, %v883
      %v1036 = vsel %vm580, 1.0, %v884
      %v1037 = vsel %vm581, 1.0, %v885
      %v1038 = vsel %vm582, 1.0, %v886
      %v1039 = vsel %vm583, 1.0, %v887
      %v1040 = vsel %vm584, 1.0, %v888
      %v1041 = vsel %vm585, 1.0, %v889
      %v1042 = vsel %vm586, 1.0, %v890
      %v1043 = vsel %vm587, 1.0, %v891
      %v1044 = vsel %vm588, 1.0, %v892
      %v1045 = vsel %vm589, 1.0, %v893
      %v1046 = vsel %vm590, 1.0, %v894
      %v1047 = vsel %vm591, 1.0, %v895
      %v1048 = vsel %vm592, 1.0, %v896
      %v1049 = vsel %vm593, 1.0, %v897
      %v1050 = vsel %vm594, 1.0, %v898
      %v1051 = vsel %vm595, 1.0, %v899
      %v1052 = vsel %vm596, 1.0, %v900
      %v1053 = vsel %vm597, 1.0, %v901
      %v1054 = vsel %vm598, 1.0, %v902
      %v1055 = vsel %vm599, 1.0, %v903
      %v1056 = vsel %vm600, 1.0, %v904
      %v1057 = vsel %vm601, 1.0, %v905
      %v1058 = vsel %vm602, 1.0, %v906
      %v1059 = vsel %vm603, 1.0, %v907
      %v1060 = vsel %vm604, 1.0, %v908
      %v1061 = vsel %vm605, 1.0, %v909
      %v1062 = vsel %vm606, 1.0, %v910
      %v1063 = vsel %vm607, 1.0, %v911
      %v1064 = vsel %vm608, 1.0, %v912
      %v1065 = vsel %vm609, 1.0, %v913
      %v1066 = vsel %vm610, 1.0, %v914
      %v1067 = vsel %vm611, 1.0, %v915
      %v1068 = vsel %vm612, 1.0, %v916
      %v1069 = vsel %vm613, 1.0, %v917
      %v1070 = vsel %vm614, 1.0, %v918
      %v1071 = vsel %vm615, 1.0, %v919
      %v1072 = vsel %vm616, 1.0, %v920
      %v1073 = vsel %vm617, 1.0, %v921
      %v1074 = vsel %vm618, 1.0, %v922
      %v1075 = vsel %vm619, 1.0, %v923
      %v1076 = vsel %vm620, 1.0, %v924
      %v1077 = vsel %vm621, 1.0, %v925
      %v1078 = vsel %vm622, 1.0, %v926
      %v1079 = vsel %vm623, 1.0, %v927
      %v1080 = vsel %vm624, 1.0, %v928
      %v1081 = vsel %vm625, 1.0, %v929
      %v1082 = vsel %vm626, 1.0, %v930
      %v1083 = vsel %vm627, 1.0, %v931
      %v1084 = vsel %vm628, 1.0, %v932
      %v1085 = vsel %vm629, 1.0, %v933
      %v1086 = vsel %vm630, 1.0, %v934
      %v1087 = vsel %vm631, 1.0, %v935
      %v1088 = vsel %vm632, 1.0, %v936
      %v1089 = vsel %vm633, 1.0, %v937
      %v1090 = vsel %vm634, 1.0, %v938
      %v1091 = vsel %vm635, 1.0, %v939
      %v1092 = vsel %vm636, 1.0, %v940
      %v1093 = vsel %vm637, 1.0, %v941
      %v1094 = vsel %vm638, 1.0, %v942
      %v1095 = vsel %vm639, 1.0, %v943
      %v1096 = vsel %vm640, 1.0, %v944
      %v1097 = vsel %vm641, 1.0, %v945
      %v1098 = vsel %vm642, 1.0, %v946
      %v1099 = vsel %vm643, 1.0, %v947
      %v1100 = vsel %vm644, 1.0, %v948
      %v1101 = vsel %vm645, 1.0, %v949
      %v1102 = vsel %vm646, 1.0, %v950
      %v1103 = vsel %vm647, 1.0, %v951
      %v1104 = vsel %vm648, 1.0, %v952
      %v1105 = vsel %vm649, 1.0, %v953
      %v1106 = vsel %vm650, 1.0, %v954
      %v1107 = vsel %vm651, 1.0, %v955
      %v1108 = vsel %vm652, 1.0, %v956
      %v1109 = vsel %vm653, 1.0, %v957
      %v1110 = vsel %vm654, 1.0, %v958
      %v1111 = vsel %vm655, 1.0, %v959
      %v1112 = vsel %vm656, 1.0, %v960
      %v1113 = vsel %vm657, 1.0, %v961
      %v1114 = vsel %vm658, 1.0, %v962
      %v1115 = vsel %vm659, 1.0, %v963
      %v1116 = vsel %vm660, 1.0, %v964
      %v1117 = vsel %vm661, 1.0, %v965
      %v1118 = vsel %vm662, 1.0, %v966
      %v1119 = vsel %vm663, 1.0, %v967
      %v1120 = vsel %vm664, 1.0, %v968
      %v1121 = vsel %vm665, 1.0, %v969
      %v1122 = vsel %vm666, 1.0, %v970
      %v1123 = vsel %vm667, 1.0, %v971
      %v1124 = vsel %vm668, 1.0, %v972
      %v1125 = vsel %vm669, 1.0, %v973
      %v1126 = vsel %vm670, 1.0, %v974
      %v1127 = vsel %vm671, 1.0, %v975
      %v1128 = vadd.f32 %v976, %v977
      %v1129 = vadd.f32 %v1128, %v978
      %v1130 = vadd.f32 %v1129, %v979
      %1131 = vadd.xlane.f32.xlu0 %v1130
      %v1132 = vpop.xlane.xlu0 %1131
      %v1133 = vadd.f32 %v980, %v981
      %v1134 = vadd.f32 %v1133, %v982
      %v1135 = vadd.f32 %v1134, %v983
      %1136 = vadd.xlane.f32.xlu0 %v1135
      %v1137 = vpop.xlane.xlu0 %1136
      %v1138 = vadd.f32 %v984, %v985
      %v1139 = vadd.f32 %v1138, %v986
      %v1140 = vadd.f32 %v1139, %v987
      %1141 = vadd.xlane.f32.xlu0 %v1140
      %v1142 = vpop.xlane.xlu0 %1141
      %v1143 = vadd.f32 %v988, %v989
      %v1144 = vadd.f32 %v1143, %v990
      %v1145 = vadd.f32 %v1144, %v991
      %1146 = vadd.xlane.f32.xlu0 %v1145
      %v1147 = vpop.xlane.xlu0 %1146
      %v1148 = vadd.f32 %v992, %v993
      %v1149 = vadd.f32 %v1148, %v994
      %v1150 = vadd.f32 %v1149, %v995
      %1151 = vadd.xlane.f32.xlu0 %v1150
      %v1152 = vpop.xlane.xlu0 %1151
      %v1153 = vadd.f32 %v996, %v997
      %v1154 = vadd.f32 %v1153, %v998
      %v1155 = vadd.f32 %v1154, %v999
      %1156 = vadd.xlane.f32.xlu0 %v1155
      %v1157 = vpop.xlane.xlu0 %1156
      %v1158 = vadd.f32 %v1000, %v1001
      %v1159 = vadd.f32 %v1158, %v1002
      %v1160 = vadd.f32 %v1159, %v1003
      %1161 = vadd.xlane.f32.xlu0 %v1160
      %v1162 = vpop.xlane.xlu0 %1161
      %v1163 = vadd.f32 %v1004, %v1005
      %v1164 = vadd.f32 %v1163, %v1006
      %v1165 = vadd.f32 %v1164, %v1007
      %1166 = vadd.xlane.f32.xlu0 %v1165
      %v1167 = vpop.xlane.xlu0 %1166
      %v1168 = vadd.f32 %v1008, %v1009
      %v1169 = vadd.f32 %v1168, %v1010
      %v1170 = vadd.f32 %v1169, %v1011
      %1171 = vadd.xlane.f32.xlu0 %v1170
      %v1172 = vpop.xlane.xlu0 %1171
      %v1173 = vadd.f32 %v1012, %v1013
      %v1174 = vadd.f32 %v1173, %v1014
      %v1175 = vadd.f32 %v1174, %v1015
      %1176 = vadd.xlane.f32.xlu0 %v1175
      %v1177 = vpop.xlane.xlu0 %1176
      %v1178 = vadd.f32 %v1016, %v1017
      %v1179 = vadd.f32 %v1178, %v1018
      %v1180 = vadd.f32 %v1179, %v1019
      %1181 = vadd.xlane.f32.xlu0 %v1180
      %v1182 = vpop.xlane.xlu0 %1181
      %v1183 = vadd.f32 %v1020, %v1021
      %v1184 = vadd.f32 %v1183, %v1022
      %v1185 = vadd.f32 %v1184, %v1023
      %1186 = vadd.xlane.f32.xlu0 %v1185
      %v1187 = vpop.xlane.xlu0 %1186
      %v1188 = vadd.f32 %v1024, %v1025
      %v1189 = vadd.f32 %v1188, %v1026
      %v1190 = vadd.f32 %v1189, %v1027
      %1191 = vadd.xlane.f32.xlu0 %v1190
      %v1192 = vpop.xlane.xlu0 %1191
      %v1193 = vadd.f32 %v1028, %v1029
      %v1194 = vadd.f32 %v1193, %v1030
      %v1195 = vadd.f32 %v1194, %v1031
      %1196 = vadd.xlane.f32.xlu0 %v1195
      %v1197 = vpop.xlane.xlu0 %1196
      %v1198 = vadd.f32 %v1032, %v1033
      %v1199 = vadd.f32 %v1198, %v1034
      %v1200 = vadd.f32 %v1199, %v1035
      %1201 = vadd.xlane.f32.xlu0 %v1200
      %v1202 = vpop.xlane.xlu0 %1201
      %v1203 = vadd.f32 %v1036, %v1037
      %v1204 = vadd.f32 %v1203, %v1038
      %v1205 = vadd.f32 %v1204, %v1039
      %1206 = vadd.xlane.f32.xlu0 %v1205
      %v1207 = vpop.xlane.xlu0 %1206
      %v1208 = vadd.f32 %v1040, %v1041
      %v1209 = vadd.f32 %v1208, %v1042
      %v1210 = vadd.f32 %v1209, %v1043
      %1211 = vadd.xlane.f32.xlu0 %v1210
      %v1212 = vpop.xlane.xlu0 %1211
      %v1213 = vadd.f32 %v1044, %v1045
      %v1214 = vadd.f32 %v1213, %v1046
      %v1215 = vadd.f32 %v1214, %v1047
      %1216 = vadd.xlane.f32.xlu0 %v1215
      %v1217 = vpop.xlane.xlu0 %1216
      %v1218 = vadd.f32 %v1048, %v1049
      %v1219 = vadd.f32 %v1218, %v1050
      %v1220 = vadd.f32 %v1219, %v1051
      %1221 = vadd.xlane.f32.xlu0 %v1220
      %v1222 = vpop.xlane.xlu0 %1221
      %v1223 = vadd.f32 %v1052, %v1053
      %v1224 = vadd.f32 %v1223, %v1054
      %v1225 = vadd.f32 %v1224, %v1055
      %1226 = vadd.xlane.f32.xlu0 %v1225
      %v1227 = vpop.xlane.xlu0 %1226
      %v1228 = vadd.f32 %v1056, %v1057
      %v1229 = vadd.f32 %v1228, %v1058
      %v1230 = vadd.f32 %v1229, %v1059
      %1231 = vadd.xlane.f32.xlu0 %v1230
      %v1232 = vpop.xlane.xlu0 %1231
      %v1233 = vadd.f32 %v1060, %v1061
      %v1234 = vadd.f32 %v1233, %v1062
      %v1235 = vadd.f32 %v1234, %v1063
      %1236 = vadd.xlane.f32.xlu0 %v1235
      %v1237 = vpop.xlane.xlu0 %1236
      %v1238 = vadd.f32 %v1064, %v1065
      %v1239 = vadd.f32 %v1238, %v1066
      %v1240 = vadd.f32 %v1239, %v1067
      %1241 = vadd.xlane.f32.xlu0 %v1240
      %v1242 = vpop.xlane.xlu0 %1241
      %v1243 = vadd.f32 %v1068, %v1069
      %v1244 = vadd.f32 %v1243, %v1070
      %v1245 = vadd.f32 %v1244, %v1071
      %1246 = vadd.xlane.f32.xlu0 %v1245
      %v1247 = vpop.xlane.xlu0 %1246
      %v1248 = vadd.f32 %v1072, %v1073
      %v1249 = vadd.f32 %v1248, %v1074
      %v1250 = vadd.f32 %v1249, %v1075
      %1251 = vadd.xlane.f32.xlu0 %v1250
      %v1252 = vpop.xlane.xlu0 %1251
      %v1253 = vadd.f32 %v1076, %v1077
      %v1254 = vadd.f32 %v1253, %v1078
      %v1255 = vadd.f32 %v1254, %v1079
      %1256 = vadd.xlane.f32.xlu0 %v1255
      %v1257 = vpop.xlane.xlu0 %1256
      %v1258 = vadd.f32 %v1080, %v1081
      %v1259 = vadd.f32 %v1258, %v1082
      %v1260 = vadd.f32 %v1259, %v1083
      %1261 = vadd.xlane.f32.xlu0 %v1260
      %v1262 = vpop.xlane.xlu0 %1261
      %v1263 = vadd.f32 %v1084, %v1085
      %v1264 = vadd.f32 %v1263, %v1086
      %v1265 = vadd.f32 %v1264, %v1087
      %1266 = vadd.xlane.f32.xlu0 %v1265
      %v1267 = vpop.xlane.xlu0 %1266
      %v1268 = vadd.f32 %v1088, %v1089
      %v1269 = vadd.f32 %v1268, %v1090
      %v1270 = vadd.f32 %v1269, %v1091
      %1271 = vadd.xlane.f32.xlu0 %v1270
      %v1272 = vpop.xlane.xlu0 %1271
      %v1273 = vadd.f32 %v1092, %v1093
      %v1274 = vadd.f32 %v1273, %v1094
      %v1275 = vadd.f32 %v1274, %v1095
      %1276 = vadd.xlane.f32.xlu0 %v1275
      %v1277 = vpop.xlane.xlu0 %1276
      %v1278 = vadd.f32 %v1096, %v1097
      %v1279 = vadd.f32 %v1278, %v1098
      %v1280 = vadd.f32 %v1279, %v1099
      %1281 = vadd.xlane.f32.xlu0 %v1280
      %v1282 = vpop.xlane.xlu0 %1281
      %v1283 = vadd.f32 %v1100, %v1101
      %v1284 = vadd.f32 %v1283, %v1102
      %v1285 = vadd.f32 %v1284, %v1103
      %1286 = vadd.xlane.f32.xlu0 %v1285
      %v1287 = vpop.xlane.xlu0 %1286
      %v1288 = vadd.f32 %v1104, %v1105
      %v1289 = vadd.f32 %v1288, %v1106
      %v1290 = vadd.f32 %v1289, %v1107
      %1291 = vadd.xlane.f32.xlu0 %v1290
      %v1292 = vpop.xlane.xlu0 %1291
      %v1293 = vadd.f32 %v1108, %v1109
      %v1294 = vadd.f32 %v1293, %v1110
      %v1295 = vadd.f32 %v1294, %v1111
      %1296 = vadd.xlane.f32.xlu0 %v1295
      %v1297 = vpop.xlane.xlu0 %1296
      %v1298 = vadd.f32 %v1112, %v1113
      %v1299 = vadd.f32 %v1298, %v1114
      %v1300 = vadd.f32 %v1299, %v1115
      %1301 = vadd.xlane.f32.xlu0 %v1300
      %v1302 = vpop.xlane.xlu0 %1301
      %v1303 = vadd.f32 %v1116, %v1117
      %v1304 = vadd.f32 %v1303, %v1118
      %v1305 = vadd.f32 %v1304, %v1119
      %1306 = vadd.xlane.f32.xlu0 %v1305
      %v1307 = vpop.xlane.xlu0 %1306
      %v1308 = vadd.f32 %v1120, %v1121
      %v1309 = vadd.f32 %v1308, %v1122
      %v1310 = vadd.f32 %v1309, %v1123
      %1311 = vadd.xlane.f32.xlu0 %v1310
      %v1312 = vpop.xlane.xlu0 %1311
      %v1313 = vadd.f32 %v1124, %v1125
      %v1314 = vadd.f32 %v1313, %v1126
      %v1315 = vadd.f32 %v1314, %v1127
      %1316 = vadd.xlane.f32.xlu0 %v1315
      %v1317 = vpop.xlane.xlu0 %1316
      %v1318 = vld [vmem:[#allocation2] sm:$0xff]
      %v1319 = vld [vmem:[#allocation2 + $0x8] sm:$0xff]
      %v1320 = vld [vmem:[#allocation2 + $0x10] sm:$0xff]
      %v1321 = vld [vmem:[#allocation2 + $0x18] sm:$0xff]
      %v1322 = vld [vmem:[#allocation2 + $0x20] sm:$0xff]
      %v1323 = vld [vmem:[#allocation2 + $0x28] sm:$0xff]
      %v1324 = vld [vmem:[#allocation2 + $0x30] sm:$0xff]
      %v1325 = vld [vmem:[#allocation2 + $0x38] sm:$0xff]
      %v1326 = vld [vmem:[#allocation2 + $0x40] sm:$0xff]
      %v1327 = vld [vmem:[#allocation2 + $0x48] sm:$0xff]
      %v1328 = vld [vmem:[#allocation2 + $0x50] sm:$0xff]
      %v1329 = vld [vmem:[#allocation2 + $0x58] sm:$0xff]
      %v1330 = vld [vmem:[#allocation2 + $0x60] sm:$0xff]
      %v1331 = vld [vmem:[#allocation2 + $0x68] sm:$0xff]
      %v1332 = vld [vmem:[#allocation2 + $0x70] sm:$0xff]
      %v1333 = vld [vmem:[#allocation2 + $0x78] sm:$0xff]
      %v1334 = vld [vmem:[#allocation2 + $0x80] sm:$0xff]
      %v1335 = vld [vmem:[#allocation2 + $0x88] sm:$0xff]
      %v1336 = vld [vmem:[#allocation2 + $0x90] sm:$0xff]
      %v1337 = vld [vmem:[#allocation2 + $0x98] sm:$0xff]
      %v1338 = vld [vmem:[#allocation2 + $0xa0] sm:$0xff]
      %v1339 = vld [vmem:[#allocation2 + $0xa8] sm:$0xff]
      %v1340 = vld [vmem:[#allocation2 + $0xb0] sm:$0xff]
      %v1341 = vld [vmem:[#allocation2 + $0xb8] sm:$0xff]
      %v1342 = vld [vmem:[#allocation2 + $0xc0] sm:$0xff]
      %v1343 = vld [vmem:[#allocation2 + $0xc8] sm:$0xff]
      %v1344 = vld [vmem:[#allocation2 + $0xd0] sm:$0xff]
      %v1345 = vld [vmem:[#allocation2 + $0xd8] sm:$0xff]
      %v1346 = vld [vmem:[#allocation2 + $0xe0] sm:$0xff]
      %v1347 = vld [vmem:[#allocation2 + $0xe8] sm:$0xff]
      %v1348 = vld [vmem:[#allocation2 + $0xf0] sm:$0xff]
      %v1349 = vld [vmem:[#allocation2 + $0xf8] sm:$0xff]
      %v1350 = vld [vmem:[#allocation2 + $0x100] sm:$0xff]
      %v1351 = vld [vmem:[#allocation2 + $0x108] sm:$0xff]
      %v1352 = vld [vmem:[#allocation2 + $0x110] sm:$0xff]
      %v1353 = vld [vmem:[#allocation2 + $0x118] sm:$0xff]
      %v1354 = vld [vmem:[#allocation2 + $0x120] sm:$0xff]
      %v1355 = vld [vmem:[#allocation2 + $0x128] sm:$0xff]
      %v1356 = vadd.f32 %v1318, %v1132
      %v1357 = vadd.f32 %v1319, %v1137
      %v1358 = vadd.f32 %v1320, %v1142
      %v1359 = vadd.f32 %v1321, %v1147
      %v1360 = vadd.f32 %v1322, %v1152
      %v1361 = vadd.f32 %v1323, %v1157
      %v1362 = vadd.f32 %v1324, %v1162
      %v1363 = vadd.f32 %v1325, %v1167
      %v1364 = vadd.f32 %v1326, %v1172
      %v1365 = vadd.f32 %v1327, %v1177
      %v1366 = vadd.f32 %v1328, %v1182
      %v1367 = vadd.f32 %v1329, %v1187
      %v1368 = vadd.f32 %v1330, %v1192
      %v1369 = vadd.f32 %v1331, %v1197
      %v1370 = vadd.f32 %v1332, %v1202
      %v1371 = vadd.f32 %v1333, %v1207
      %v1372 = vadd.f32 %v1334, %v1212
      %v1373 = vadd.f32 %v1335, %v1217
      %v1374 = vadd.f32 %v1336, %v1222
      %v1375 = vadd.f32 %v1337, %v1227
      %v1376 = vadd.f32 %v1338, %v1232
      %v1377 = vadd.f32 %v1339, %v1237
      %v1378 = vadd.f32 %v1340, %v1242
      %v1379 = vadd.f32 %v1341, %v1247
      %v1380 = vadd.f32 %v1342, %v1252
      %v1381 = vadd.f32 %v1343, %v1257
      %v1382 = vadd.f32 %v1344, %v1262
      %v1383 = vadd.f32 %v1345, %v1267
      %v1384 = vadd.f32 %v1346, %v1272
      %v1385 = vadd.f32 %v1347, %v1277
      %v1386 = vadd.f32 %v1348, %v1282
      %v1387 = vadd.f32 %v1349, %v1287
      %v1388 = vadd.f32 %v1350, %v1292
      %v1389 = vadd.f32 %v1351, %v1297
      %v1390 = vadd.f32 %v1352, %v1302
      %v1391 = vadd.f32 %v1353, %v1307
      %v1392 = vadd.f32 %v1354, %v1312
      %v1393 = vadd.f32 %v1355, %v1317
      %vm1394 = vcmask 7168
      %1395 = vst.msk [vmem:[#allocation2] sm:$0xff] %vm1394, %v1356
      %1396 = vst.msk [vmem:[#allocation2 + $0x8] sm:$0xff] %vm1394, %v1357
      %1397 = vst.msk [vmem:[#allocation2 + $0x10] sm:$0xff] %vm1394, %v1358
      %1398 = vst.msk [vmem:[#allocation2 + $0x18] sm:$0xff] %vm1394, %v1359
      %1399 = vst.msk [vmem:[#allocation2 + $0x20] sm:$0xff] %vm1394, %v1360
      %1400 = vst.msk [vmem:[#allocation2 + $0x28] sm:$0xff] %vm1394, %v1361
      %1401 = vst.msk [vmem:[#allocation2 + $0x30] sm:$0xff] %vm1394, %v1362
      %1402 = vst.msk [vmem:[#allocation2 + $0x38] sm:$0xff] %vm1394, %v1363
      %1403 = vst.msk [vmem:[#allocation2 + $0x40] sm:$0xff] %vm1394, %v1364
      %1404 = vst.msk [vmem:[#allocation2 + $0x48] sm:$0xff] %vm1394, %v1365
      %1405 = vst.msk [vmem:[#allocation2 + $0x50] sm:$0xff] %vm1394, %v1366
      %1406 = vst.msk [vmem:[#allocation2 + $0x58] sm:$0xff] %vm1394, %v1367
      %1407 = vst.msk [vmem:[#allocation2 + $0x60] sm:$0xff] %vm1394, %v1368
      %1408 = vst.msk [vmem:[#allocation2 + $0x68] sm:$0xff] %vm1394, %v1369
      %1409 = vst.msk [vmem:[#allocation2 + $0x70] sm:$0xff] %vm1394, %v1370
      %1410 = vst.msk [vmem:[#allocation2 + $0x78] sm:$0xff] %vm1394, %v1371
      %1411 = vst.msk [vmem:[#allocation2 + $0x80] sm:$0xff] %vm1394, %v1372
      %1412 = vst.msk [vmem:[#allocation2 + $0x88] sm:$0xff] %vm1394, %v1373
      %1413 = vst.msk [vmem:[#allocation2 + $0x90] sm:$0xff] %vm1394, %v1374
      %1414 = vst.msk [vmem:[#allocation2 + $0x98] sm:$0xff] %vm1394, %v1375
      %1415 = vst.msk [vmem:[#allocation2 + $0xa0] sm:$0xff] %vm1394, %v1376
      %1416 = vst.msk [vmem:[#allocation2 + $0xa8] sm:$0xff] %vm1394, %v1377
      %1417 = vst.msk [vmem:[#allocation2 + $0xb0] sm:$0xff] %vm1394, %v1378
      %1418 = vst.msk [vmem:[#allocation2 + $0xb8] sm:$0xff] %vm1394, %v1379
      %1419 = vst.msk [vmem:[#allocation2 + $0xc0] sm:$0xff] %vm1394, %v1380
      %1420 = vst.msk [vmem:[#allocation2 + $0xc8] sm:$0xff] %vm1394, %v1381
      %1421 = vst.msk [vmem:[#allocation2 + $0xd0] sm:$0xff] %vm1394, %v1382
      %1422 = vst.msk [vmem:[#allocation2 + $0xd8] sm:$0xff] %vm1394, %v1383
      %1423 = vst.msk [vmem:[#allocation2 + $0xe0] sm:$0xff] %vm1394, %v1384
      %1424 = vst.msk [vmem:[#allocation2 + $0xe8] sm:$0xff] %vm1394, %v1385
      %1425 = vst.msk [vmem:[#allocation2 + $0xf0] sm:$0xff] %vm1394, %v1386
      %1426 = vst.msk [vmem:[#allocation2 + $0xf8] sm:$0xff] %vm1394, %v1387
      %1427 = vst.msk [vmem:[#allocation2 + $0x100] sm:$0xff] %vm1394, %v1388
      %1428 = vst.msk [vmem:[#allocation2 + $0x108] sm:$0xff] %vm1394, %v1389
      %1429 = vst.msk [vmem:[#allocation2 + $0x110] sm:$0xff] %vm1394, %v1390
      %1430 = vst.msk [vmem:[#allocation2 + $0x118] sm:$0xff] %vm1394, %v1391
      %1431 = vst.msk [vmem:[#allocation2 + $0x120] sm:$0xff] %vm1394, %v1392
      %1432 = vst.msk [vmem:[#allocation2 + $0x128] sm:$0xff] %vm1394, %v1393
      %v1433 = vld [vmem:[%s219 + $0x4] sm:$0xf]
      %v1435 = vlaneseq
      %v1436 = vshrl.u32 %v1435, 7
      %v1437 = vsub.s32 0, %v1436
      %v1438 = vrot.slane %v1433, %v1437
      %v1439 = vlaneseq
      %v1440 = vshrl.u32 %v1439, 7
      %v1441 = vsub.s32 1, %v1440
      %v1442 = vrot.slane %v1433, %v1441
      %v1443 = vlaneseq
      %v1444 = vshrl.u32 %v1443, 7
      %v1445 = vsub.s32 2, %v1444
      %v1446 = vrot.slane %v1433, %v1445
      %v1447 = vlaneseq
      %v1448 = vshrl.u32 %v1447, 7
      %v1449 = vsub.s32 3, %v1448
      %v1450 = vrot.slane %v1433, %v1449
      %vm1455 = vcmp.gt.f32.partialorder %v312, %v1438
      %vm1456 = vcmp.gt.f32.partialorder %v312, %v1442
      %vm1457 = vcmp.gt.f32.partialorder %v312, %v1446
      %vm1458 = vcmp.gt.f32.partialorder %v312, %v1450
      %vm1459 = vcmp.gt.f32.partialorder %v317, %v1438
      %vm1460 = vcmp.gt.f32.partialorder %v317, %v1442
      %vm1461 = vcmp.gt.f32.partialorder %v317, %v1446
      %vm1462 = vcmp.gt.f32.partialorder %v317, %v1450
      %vm1463 = vcmp.gt.f32.partialorder %v322, %v1438
      %vm1464 = vcmp.gt.f32.partialorder %v322, %v1442
      %vm1465 = vcmp.gt.f32.partialorder %v322, %v1446
      %vm1466 = vcmp.gt.f32.partialorder %v322, %v1450
      %vm1467 = vcmp.gt.f32.partialorder %v327, %v1438
      %vm1468 = vcmp.gt.f32.partialorder %v327, %v1442
      %vm1469 = vcmp.gt.f32.partialorder %v327, %v1446
      %vm1470 = vcmp.gt.f32.partialorder %v327, %v1450
      %vm1471 = vcmp.gt.f32.partialorder %v332, %v1438
      %vm1472 = vcmp.gt.f32.partialorder %v332, %v1442
      %vm1473 = vcmp.gt.f32.partialorder %v332, %v1446
      %vm1474 = vcmp.gt.f32.partialorder %v332, %v1450
      %vm1475 = vcmp.gt.f32.partialorder %v337, %v1438
      %vm1476 = vcmp.gt.f32.partialorder %v337, %v1442
      %vm1477 = vcmp.gt.f32.partialorder %v337, %v1446
      %vm1478 = vcmp.gt.f32.partialorder %v337, %v1450
      %vm1479 = vcmp.gt.f32.partialorder %v342, %v1438
      %vm1480 = vcmp.gt.f32.partialorder %v342, %v1442
      %vm1481 = vcmp.gt.f32.partialorder %v342, %v1446
      %vm1482 = vcmp.gt.f32.partialorder %v342, %v1450
      %vm1483 = vcmp.gt.f32.partialorder %v347, %v1438
      %vm1484 = vcmp.gt.f32.partialorder %v347, %v1442
      %vm1485 = vcmp.gt.f32.partialorder %v347, %v1446
      %vm1486 = vcmp.gt.f32.partialorder %v347, %v1450
      %vm1487 = vcmp.gt.f32.partialorder %v352, %v1438
      %vm1488 = vcmp.gt.f32.partialorder %v352, %v1442
      %vm1489 = vcmp.gt.f32.partialorder %v352, %v1446
      %vm1490 = vcmp.gt.f32.partialorder %v352, %v1450
      %vm1491 = vcmp.gt.f32.partialorder %v357, %v1438
      %vm1492 = vcmp.gt.f32.partialorder %v357, %v1442
      %vm1493 = vcmp.gt.f32.partialorder %v357, %v1446
      %vm1494 = vcmp.gt.f32.partialorder %v357, %v1450
      %vm1495 = vcmp.gt.f32.partialorder %v362, %v1438
      %vm1496 = vcmp.gt.f32.partialorder %v362, %v1442
      %vm1497 = vcmp.gt.f32.partialorder %v362, %v1446
      %vm1498 = vcmp.gt.f32.partialorder %v362, %v1450
      %vm1499 = vcmp.gt.f32.partialorder %v367, %v1438
      %vm1500 = vcmp.gt.f32.partialorder %v367, %v1442
      %vm1501 = vcmp.gt.f32.partialorder %v367, %v1446
      %vm1502 = vcmp.gt.f32.partialorder %v367, %v1450
      %vm1503 = vcmp.gt.f32.partialorder %v372, %v1438
      %vm1504 = vcmp.gt.f32.partialorder %v372, %v1442
      %vm1505 = vcmp.gt.f32.partialorder %v372, %v1446
      %vm1506 = vcmp.gt.f32.partialorder %v372, %v1450
      %vm1507 = vcmp.gt.f32.partialorder %v377, %v1438
      %vm1508 = vcmp.gt.f32.partialorder %v377, %v1442
      %vm1509 = vcmp.gt.f32.partialorder %v377, %v1446
      %vm1510 = vcmp.gt.f32.partialorder %v377, %v1450
      %vm1511 = vcmp.gt.f32.partialorder %v382, %v1438
      %vm1512 = vcmp.gt.f32.partialorder %v382, %v1442
      %vm1513 = vcmp.gt.f32.partialorder %v382, %v1446
      %vm1514 = vcmp.gt.f32.partialorder %v382, %v1450
      %vm1515 = vcmp.gt.f32.partialorder %v387, %v1438
      %vm1516 = vcmp.gt.f32.partialorder %v387, %v1442
      %vm1517 = vcmp.gt.f32.partialorder %v387, %v1446
      %vm1518 = vcmp.gt.f32.partialorder %v387, %v1450
      %vm1519 = vcmp.gt.f32.partialorder %v392, %v1438
      %vm1520 = vcmp.gt.f32.partialorder %v392, %v1442
      %vm1521 = vcmp.gt.f32.partialorder %v392, %v1446
      %vm1522 = vcmp.gt.f32.partialorder %v392, %v1450
      %vm1523 = vcmp.gt.f32.partialorder %v397, %v1438
      %vm1524 = vcmp.gt.f32.partialorder %v397, %v1442
      %vm1525 = vcmp.gt.f32.partialorder %v397, %v1446
      %vm1526 = vcmp.gt.f32.partialorder %v397, %v1450
      %vm1527 = vcmp.gt.f32.partialorder %v402, %v1438
      %vm1528 = vcmp.gt.f32.partialorder %v402, %v1442
      %vm1529 = vcmp.gt.f32.partialorder %v402, %v1446
      %vm1530 = vcmp.gt.f32.partialorder %v402, %v1450
      %vm1531 = vcmp.gt.f32.partialorder %v407, %v1438
      %vm1532 = vcmp.gt.f32.partialorder %v407, %v1442
      %vm1533 = vcmp.gt.f32.partialorder %v407, %v1446
      %vm1534 = vcmp.gt.f32.partialorder %v407, %v1450
      %vm1535 = vcmp.gt.f32.partialorder %v412, %v1438
      %vm1536 = vcmp.gt.f32.partialorder %v412, %v1442
      %vm1537 = vcmp.gt.f32.partialorder %v412, %v1446
      %vm1538 = vcmp.gt.f32.partialorder %v412, %v1450
      %vm1539 = vcmp.gt.f32.partialorder %v417, %v1438
      %vm1540 = vcmp.gt.f32.partialorder %v417, %v1442
      %vm1541 = vcmp.gt.f32.partialorder %v417, %v1446
      %vm1542 = vcmp.gt.f32.partialorder %v417, %v1450
      %vm1543 = vcmp.gt.f32.partialorder %v422, %v1438
      %vm1544 = vcmp.gt.f32.partialorder %v422, %v1442
      %vm1545 = vcmp.gt.f32.partialorder %v422, %v1446
      %vm1546 = vcmp.gt.f32.partialorder %v422, %v1450
      %vm1547 = vcmp.gt.f32.partialorder %v427, %v1438
      %vm1548 = vcmp.gt.f32.partialorder %v427, %v1442
      %vm1549 = vcmp.gt.f32.partialorder %v427, %v1446
      %vm1550 = vcmp.gt.f32.partialorder %v427, %v1450
      %vm1551 = vcmp.gt.f32.partialorder %v432, %v1438
      %vm1552 = vcmp.gt.f32.partialorder %v432, %v1442
      %vm1553 = vcmp.gt.f32.partialorder %v432, %v1446
      %vm1554 = vcmp.gt.f32.partialorder %v432, %v1450
      %vm1555 = vcmp.gt.f32.partialorder %v437, %v1438
      %vm1556 = vcmp.gt.f32.partialorder %v437, %v1442
      %vm1557 = vcmp.gt.f32.partialorder %v437, %v1446
      %vm1558 = vcmp.gt.f32.partialorder %v437, %v1450
      %vm1559 = vcmp.gt.f32.partialorder %v442, %v1438
      %vm1560 = vcmp.gt.f32.partialorder %v442, %v1442
      %vm1561 = vcmp.gt.f32.partialorder %v442, %v1446
      %vm1562 = vcmp.gt.f32.partialorder %v442, %v1450
      %vm1563 = vcmp.gt.f32.partialorder %v447, %v1438
      %vm1564 = vcmp.gt.f32.partialorder %v447, %v1442
      %vm1565 = vcmp.gt.f32.partialorder %v447, %v1446
      %vm1566 = vcmp.gt.f32.partialorder %v447, %v1450
      %vm1567 = vcmp.gt.f32.partialorder %v452, %v1438
      %vm1568 = vcmp.gt.f32.partialorder %v452, %v1442
      %vm1569 = vcmp.gt.f32.partialorder %v452, %v1446
      %vm1570 = vcmp.gt.f32.partialorder %v452, %v1450
      %vm1571 = vcmp.gt.f32.partialorder %v457, %v1438
      %vm1572 = vcmp.gt.f32.partialorder %v457, %v1442
      %vm1573 = vcmp.gt.f32.partialorder %v457, %v1446
      %vm1574 = vcmp.gt.f32.partialorder %v457, %v1450
      %vm1575 = vcmp.gt.f32.partialorder %v462, %v1438
      %vm1576 = vcmp.gt.f32.partialorder %v462, %v1442
      %vm1577 = vcmp.gt.f32.partialorder %v462, %v1446
      %vm1578 = vcmp.gt.f32.partialorder %v462, %v1450
      %vm1579 = vcmp.gt.f32.partialorder %v467, %v1438
      %vm1580 = vcmp.gt.f32.partialorder %v467, %v1442
      %vm1581 = vcmp.gt.f32.partialorder %v467, %v1446
      %vm1582 = vcmp.gt.f32.partialorder %v467, %v1450
      %vm1583 = vcmp.gt.f32.partialorder %v472, %v1438
      %vm1584 = vcmp.gt.f32.partialorder %v472, %v1442
      %vm1585 = vcmp.gt.f32.partialorder %v472, %v1446
      %vm1586 = vcmp.gt.f32.partialorder %v472, %v1450
      %vm1587 = vcmp.gt.f32.partialorder %v477, %v1438
      %vm1588 = vcmp.gt.f32.partialorder %v477, %v1442
      %vm1589 = vcmp.gt.f32.partialorder %v477, %v1446
      %vm1590 = vcmp.gt.f32.partialorder %v477, %v1450
      %vm1591 = vcmp.gt.f32.partialorder %v482, %v1438
      %vm1592 = vcmp.gt.f32.partialorder %v482, %v1442
      %vm1593 = vcmp.gt.f32.partialorder %v482, %v1446
      %vm1594 = vcmp.gt.f32.partialorder %v482, %v1450
      %vm1595 = vcmp.gt.f32.partialorder %v487, %v1438
      %vm1596 = vcmp.gt.f32.partialorder %v487, %v1442
      %vm1597 = vcmp.gt.f32.partialorder %v487, %v1446
      %vm1598 = vcmp.gt.f32.partialorder %v487, %v1450
      %vm1599 = vcmp.gt.f32.partialorder %v492, %v1438
      %vm1600 = vcmp.gt.f32.partialorder %v492, %v1442
      %vm1601 = vcmp.gt.f32.partialorder %v492, %v1446
      %vm1602 = vcmp.gt.f32.partialorder %v492, %v1450
      %vm1603 = vcmp.gt.f32.partialorder %v497, %v1438
      %vm1604 = vcmp.gt.f32.partialorder %v497, %v1442
      %vm1605 = vcmp.gt.f32.partialorder %v497, %v1446
      %vm1606 = vcmp.gt.f32.partialorder %v497, %v1450
      %vm1607 = vcmp.eq.f32.partialorder %v312, %v1438
      %vm1608 = vcmp.eq.f32.partialorder %v312, %v1442
      %vm1609 = vcmp.eq.f32.partialorder %v312, %v1446
      %vm1610 = vcmp.eq.f32.partialorder %v312, %v1450
      %vm1611 = vcmp.eq.f32.partialorder %v317, %v1438
      %vm1612 = vcmp.eq.f32.partialorder %v317, %v1442
      %vm1613 = vcmp.eq.f32.partialorder %v317, %v1446
      %vm1614 = vcmp.eq.f32.partialorder %v317, %v1450
      %vm1615 = vcmp.eq.f32.partialorder %v322, %v1438
      %vm1616 = vcmp.eq.f32.partialorder %v322, %v1442
      %vm1617 = vcmp.eq.f32.partialorder %v322, %v1446
      %vm1618 = vcmp.eq.f32.partialorder %v322, %v1450
      %vm1619 = vcmp.eq.f32.partialorder %v327, %v1438
      %vm1620 = vcmp.eq.f32.partialorder %v327, %v1442
      %vm1621 = vcmp.eq.f32.partialorder %v327, %v1446
      %vm1622 = vcmp.eq.f32.partialorder %v327, %v1450
      %vm1623 = vcmp.eq.f32.partialorder %v332, %v1438
      %vm1624 = vcmp.eq.f32.partialorder %v332, %v1442
      %vm1625 = vcmp.eq.f32.partialorder %v332, %v1446
      %vm1626 = vcmp.eq.f32.partialorder %v332, %v1450
      %vm1627 = vcmp.eq.f32.partialorder %v337, %v1438
      %vm1628 = vcmp.eq.f32.partialorder %v337, %v1442
      %vm1629 = vcmp.eq.f32.partialorder %v337, %v1446
      %vm1630 = vcmp.eq.f32.partialorder %v337, %v1450
      %vm1631 = vcmp.eq.f32.partialorder %v342, %v1438
      %vm1632 = vcmp.eq.f32.partialorder %v342, %v1442
      %vm1633 = vcmp.eq.f32.partialorder %v342, %v1446
      %vm1634 = vcmp.eq.f32.partialorder %v342, %v1450
      %vm1635 = vcmp.eq.f32.partialorder %v347, %v1438
      %vm1636 = vcmp.eq.f32.partialorder %v347, %v1442
      %vm1637 = vcmp.eq.f32.partialorder %v347, %v1446
      %vm1638 = vcmp.eq.f32.partialorder %v347, %v1450
      %vm1639 = vcmp.eq.f32.partialorder %v352, %v1438
      %vm1640 = vcmp.eq.f32.partialorder %v352, %v1442
      %vm1641 = vcmp.eq.f32.partialorder %v352, %v1446
      %vm1642 = vcmp.eq.f32.partialorder %v352, %v1450
      %vm1643 = vcmp.eq.f32.partialorder %v357, %v1438
      %vm1644 = vcmp.eq.f32.partialorder %v357, %v1442
      %vm1645 = vcmp.eq.f32.partialorder %v357, %v1446
      %vm1646 = vcmp.eq.f32.partialorder %v357, %v1450
      %vm1647 = vcmp.eq.f32.partialorder %v362, %v1438
      %vm1648 = vcmp.eq.f32.partialorder %v362, %v1442
      %vm1649 = vcmp.eq.f32.partialorder %v362, %v1446
      %vm1650 = vcmp.eq.f32.partialorder %v362, %v1450
      %vm1651 = vcmp.eq.f32.partialorder %v367, %v1438
      %vm1652 = vcmp.eq.f32.partialorder %v367, %v1442
      %vm1653 = vcmp.eq.f32.partialorder %v367, %v1446
      %vm1654 = vcmp.eq.f32.partialorder %v367, %v1450
      %vm1655 = vcmp.eq.f32.partialorder %v372, %v1438
      %vm1656 = vcmp.eq.f32.partialorder %v372, %v1442
      %vm1657 = vcmp.eq.f32.partialorder %v372, %v1446
      %vm1658 = vcmp.eq.f32.partialorder %v372, %v1450
      %vm1659 = vcmp.eq.f32.partialorder %v377, %v1438
      %vm1660 = vcmp.eq.f32.partialorder %v377, %v1442
      %vm1661 = vcmp.eq.f32.partialorder %v377, %v1446
      %vm1662 = vcmp.eq.f32.partialorder %v377, %v1450
      %vm1663 = vcmp.eq.f32.partialorder %v382, %v1438
      %vm1664 = vcmp.eq.f32.partialorder %v382, %v1442
      %vm1665 = vcmp.eq.f32.partialorder %v382, %v1446
      %vm1666 = vcmp.eq.f32.partialorder %v382, %v1450
      %vm1667 = vcmp.eq.f32.partialorder %v387, %v1438
      %vm1668 = vcmp.eq.f32.partialorder %v387, %v1442
      %vm1669 = vcmp.eq.f32.partialorder %v387, %v1446
      %vm1670 = vcmp.eq.f32.partialorder %v387, %v1450
      %vm1671 = vcmp.eq.f32.partialorder %v392, %v1438
      %vm1672 = vcmp.eq.f32.partialorder %v392, %v1442
      %vm1673 = vcmp.eq.f32.partialorder %v392, %v1446
      %vm1674 = vcmp.eq.f32.partialorder %v392, %v1450
      %vm1675 = vcmp.eq.f32.partialorder %v397, %v1438
      %vm1676 = vcmp.eq.f32.partialorder %v397, %v1442
      %vm1677 = vcmp.eq.f32.partialorder %v397, %v1446
      %vm1678 = vcmp.eq.f32.partialorder %v397, %v1450
      %vm1679 = vcmp.eq.f32.partialorder %v402, %v1438
      %vm1680 = vcmp.eq.f32.partialorder %v402, %v1442
      %vm1681 = vcmp.eq.f32.partialorder %v402, %v1446
      %vm1682 = vcmp.eq.f32.partialorder %v402, %v1450
      %vm1683 = vcmp.eq.f32.partialorder %v407, %v1438
      %vm1684 = vcmp.eq.f32.partialorder %v407, %v1442
      %vm1685 = vcmp.eq.f32.partialorder %v407, %v1446
      %vm1686 = vcmp.eq.f32.partialorder %v407, %v1450
      %vm1687 = vcmp.eq.f32.partialorder %v412, %v1438
      %vm1688 = vcmp.eq.f32.partialorder %v412, %v1442
      %vm1689 = vcmp.eq.f32.partialorder %v412, %v1446
      %vm1690 = vcmp.eq.f32.partialorder %v412, %v1450
      %vm1691 = vcmp.eq.f32.partialorder %v417, %v1438
      %vm1692 = vcmp.eq.f32.partialorder %v417, %v1442
      %vm1693 = vcmp.eq.f32.partialorder %v417, %v1446
      %vm1694 = vcmp.eq.f32.partialorder %v417, %v1450
      %vm1695 = vcmp.eq.f32.partialorder %v422, %v1438
      %vm1696 = vcmp.eq.f32.partialorder %v422, %v1442
      %vm1697 = vcmp.eq.f32.partialorder %v422, %v1446
      %vm1698 = vcmp.eq.f32.partialorder %v422, %v1450
      %vm1699 = vcmp.eq.f32.partialorder %v427, %v1438
      %vm1700 = vcmp.eq.f32.partialorder %v427, %v1442
      %vm1701 = vcmp.eq.f32.partialorder %v427, %v1446
      %vm1702 = vcmp.eq.f32.partialorder %v427, %v1450
      %vm1703 = vcmp.eq.f32.partialorder %v432, %v1438
      %vm1704 = vcmp.eq.f32.partialorder %v432, %v1442
      %vm1705 = vcmp.eq.f32.partialorder %v432, %v1446
      %vm1706 = vcmp.eq.f32.partialorder %v432, %v1450
      %vm1707 = vcmp.eq.f32.partialorder %v437, %v1438
      %vm1708 = vcmp.eq.f32.partialorder %v437, %v1442
      %vm1709 = vcmp.eq.f32.partialorder %v437, %v1446
      %vm1710 = vcmp.eq.f32.partialorder %v437, %v1450
      %vm1711 = vcmp.eq.f32.partialorder %v442, %v1438
      %vm1712 = vcmp.eq.f32.partialorder %v442, %v1442
      %vm1713 = vcmp.eq.f32.partialorder %v442, %v1446
      %vm1714 = vcmp.eq.f32.partialorder %v442, %v1450
      %vm1715 = vcmp.eq.f32.partialorder %v447, %v1438
      %vm1716 = vcmp.eq.f32.partialorder %v447, %v1442
      %vm1717 = vcmp.eq.f32.partialorder %v447, %v1446
      %vm1718 = vcmp.eq.f32.partialorder %v447, %v1450
      %vm1719 = vcmp.eq.f32.partialorder %v452, %v1438
      %vm1720 = vcmp.eq.f32.partialorder %v452, %v1442
      %vm1721 = vcmp.eq.f32.partialorder %v452, %v1446
      %vm1722 = vcmp.eq.f32.partialorder %v452, %v1450
      %vm1723 = vcmp.eq.f32.partialorder %v457, %v1438
      %vm1724 = vcmp.eq.f32.partialorder %v457, %v1442
      %vm1725 = vcmp.eq.f32.partialorder %v457, %v1446
      %vm1726 = vcmp.eq.f32.partialorder %v457, %v1450
      %vm1727 = vcmp.eq.f32.partialorder %v462, %v1438
      %vm1728 = vcmp.eq.f32.partialorder %v462, %v1442
      %vm1729 = vcmp.eq.f32.partialorder %v462, %v1446
      %vm1730 = vcmp.eq.f32.partialorder %v462, %v1450
      %vm1731 = vcmp.eq.f32.partialorder %v467, %v1438
      %vm1732 = vcmp.eq.f32.partialorder %v467, %v1442
      %vm1733 = vcmp.eq.f32.partialorder %v467, %v1446
      %vm1734 = vcmp.eq.f32.partialorder %v467, %v1450
      %vm1735 = vcmp.eq.f32.partialorder %v472, %v1438
      %vm1736 = vcmp.eq.f32.partialorder %v472, %v1442
      %vm1737 = vcmp.eq.f32.partialorder %v472, %v1446
      %vm1738 = vcmp.eq.f32.partialorder %v472, %v1450
      %vm1739 = vcmp.eq.f32.partialorder %v477, %v1438
      %vm1740 = vcmp.eq.f32.partialorder %v477, %v1442
      %vm1741 = vcmp.eq.f32.partialorder %v477, %v1446
      %vm1742 = vcmp.eq.f32.partialorder %v477, %v1450
      %vm1743 = vcmp.eq.f32.partialorder %v482, %v1438
      %vm1744 = vcmp.eq.f32.partialorder %v482, %v1442
      %vm1745 = vcmp.eq.f32.partialorder %v482, %v1446
      %vm1746 = vcmp.eq.f32.partialorder %v482, %v1450
      %vm1747 = vcmp.eq.f32.partialorder %v487, %v1438
      %vm1748 = vcmp.eq.f32.partialorder %v487, %v1442
      %vm1749 = vcmp.eq.f32.partialorder %v487, %v1446
      %vm1750 = vcmp.eq.f32.partialorder %v487, %v1450
      %vm1751 = vcmp.eq.f32.partialorder %v492, %v1438
      %vm1752 = vcmp.eq.f32.partialorder %v492, %v1442
      %vm1753 = vcmp.eq.f32.partialorder %v492, %v1446
      %vm1754 = vcmp.eq.f32.partialorder %v492, %v1450
      %vm1755 = vcmp.eq.f32.partialorder %v497, %v1438
      %vm1756 = vcmp.eq.f32.partialorder %v497, %v1442
      %vm1757 = vcmp.eq.f32.partialorder %v497, %v1446
      %vm1758 = vcmp.eq.f32.partialorder %v497, %v1450
      %v1759 = vsel %vm1607, 0.5, 0.0
      %v1760 = vsel %vm1608, 0.5, 0.0
      %v1761 = vsel %vm1609, 0.5, 0.0
      %v1762 = vsel %vm1610, 0.5, 0.0
      %v1763 = vsel %vm1611, 0.5, 0.0
      %v1764 = vsel %vm1612, 0.5, 0.0
      %v1765 = vsel %vm1613, 0.5, 0.0
      %v1766 = vsel %vm1614, 0.5, 0.0
      %v1767 = vsel %vm1615, 0.5, 0.0
      %v1768 = vsel %vm1616, 0.5, 0.0
      %v1769 = vsel %vm1617, 0.5, 0.0
      %v1770 = vsel %vm1618, 0.5, 0.0
      %v1771 = vsel %vm1619, 0.5, 0.0
      %v1772 = vsel %vm1620, 0.5, 0.0
      %v1773 = vsel %vm1621, 0.5, 0.0
      %v1774 = vsel %vm1622, 0.5, 0.0
      %v1775 = vsel %vm1623, 0.5, 0.0
      %v1776 = vsel %vm1624, 0.5, 0.0
      %v1777 = vsel %vm1625, 0.5, 0.0
      %v1778 = vsel %vm1626, 0.5, 0.0
      %v1779 = vsel %vm1627, 0.5, 0.0
      %v1780 = vsel %vm1628, 0.5, 0.0
      %v1781 = vsel %vm1629, 0.5, 0.0
      %v1782 = vsel %vm1630, 0.5, 0.0
      %v1783 = vsel %vm1631, 0.5, 0.0
      %v1784 = vsel %vm1632, 0.5, 0.0
      %v1785 = vsel %vm1633, 0.5, 0.0
      %v1786 = vsel %vm1634, 0.5, 0.0
      %v1787 = vsel %vm1635, 0.5, 0.0
      %v1788 = vsel %vm1636, 0.5, 0.0
      %v1789 = vsel %vm1637, 0.5, 0.0
      %v1790 = vsel %vm1638, 0.5, 0.0
      %v1791 = vsel %vm1639, 0.5, 0.0
      %v1792 = vsel %vm1640, 0.5, 0.0
      %v1793 = vsel %vm1641, 0.5, 0.0
      %v1794 = vsel %vm1642, 0.5, 0.0
      %v1795 = vsel %vm1643, 0.5, 0.0
      %v1796 = vsel %vm1644, 0.5, 0.0
      %v1797 = vsel %vm1645, 0.5, 0.0
      %v1798 = vsel %vm1646, 0.5, 0.0
      %v1799 = vsel %vm1647, 0.5, 0.0
      %v1800 = vsel %vm1648, 0.5, 0.0
      %v1801 = vsel %vm1649, 0.5, 0.0
      %v1802 = vsel %vm1650, 0.5, 0.0
      %v1803 = vsel %vm1651, 0.5, 0.0
      %v1804 = vsel %vm1652, 0.5, 0.0
      %v1805 = vsel %vm1653, 0.5, 0.0
      %v1806 = vsel %vm1654, 0.5, 0.0
      %v1807 = vsel %vm1655, 0.5, 0.0
      %v1808 = vsel %vm1656, 0.5, 0.0
      %v1809 = vsel %vm1657, 0.5, 0.0
      %v1810 = vsel %vm1658, 0.5, 0.0
      %v1811 = vsel %vm1659, 0.5, 0.0
      %v1812 = vsel %vm1660, 0.5, 0.0
      %v1813 = vsel %vm1661, 0.5, 0.0
      %v1814 = vsel %vm1662, 0.5, 0.0
      %v1815 = vsel %vm1663, 0.5, 0.0
      %v1816 = vsel %vm1664, 0.5, 0.0
      %v1817 = vsel %vm1665, 0.5, 0.0
      %v1818 = vsel %vm1666, 0.5, 0.0
      %v1819 = vsel %vm1667, 0.5, 0.0
      %v1820 = vsel %vm1668, 0.5, 0.0
      %v1821 = vsel %vm1669, 0.5, 0.0
      %v1822 = vsel %vm1670, 0.5, 0.0
      %v1823 = vsel %vm1671, 0.5, 0.0
      %v1824 = vsel %vm1672, 0.5, 0.0
      %v1825 = vsel %vm1673, 0.5, 0.0
      %v1826 = vsel %vm1674, 0.5, 0.0
      %v1827 = vsel %vm1675, 0.5, 0.0
      %v1828 = vsel %vm1676, 0.5, 0.0
      %v1829 = vsel %vm1677, 0.5, 0.0
      %v1830 = vsel %vm1678, 0.5, 0.0
      %v1831 = vsel %vm1679, 0.5, 0.0
      %v1832 = vsel %vm1680, 0.5, 0.0
      %v1833 = vsel %vm1681, 0.5, 0.0
      %v1834 = vsel %vm1682, 0.5, 0.0
      %v1835 = vsel %vm1683, 0.5, 0.0
      %v1836 = vsel %vm1684, 0.5, 0.0
      %v1837 = vsel %vm1685, 0.5, 0.0
      %v1838 = vsel %vm1686, 0.5, 0.0
      %v1839 = vsel %vm1687, 0.5, 0.0
      %v1840 = vsel %vm1688, 0.5, 0.0
      %v1841 = vsel %vm1689, 0.5, 0.0
      %v1842 = vsel %vm1690, 0.5, 0.0
      %v1843 = vsel %vm1691, 0.5, 0.0
      %v1844 = vsel %vm1692, 0.5, 0.0
      %v1845 = vsel %vm1693, 0.5, 0.0
      %v1846 = vsel %vm1694, 0.5, 0.0
      %v1847 = vsel %vm1695, 0.5, 0.0
      %v1848 = vsel %vm1696, 0.5, 0.0
      %v1849 = vsel %vm1697, 0.5, 0.0
      %v1850 = vsel %vm1698, 0.5, 0.0
      %v1851 = vsel %vm1699, 0.5, 0.0
      %v1852 = vsel %vm1700, 0.5, 0.0
      %v1853 = vsel %vm1701, 0.5, 0.0
      %v1854 = vsel %vm1702, 0.5, 0.0
      %v1855 = vsel %vm1703, 0.5, 0.0
      %v1856 = vsel %vm1704, 0.5, 0.0
      %v1857 = vsel %vm1705, 0.5, 0.0
      %v1858 = vsel %vm1706, 0.5, 0.0
      %v1859 = vsel %vm1707, 0.5, 0.0
      %v1860 = vsel %vm1708, 0.5, 0.0
      %v1861 = vsel %vm1709, 0.5, 0.0
      %v1862 = vsel %vm1710, 0.5, 0.0
      %v1863 = vsel %vm1711, 0.5, 0.0
      %v1864 = vsel %vm1712, 0.5, 0.0
      %v1865 = vsel %vm1713, 0.5, 0.0
      %v1866 = vsel %vm1714, 0.5, 0.0
      %v1867 = vsel %vm1715, 0.5, 0.0
      %v1868 = vsel %vm1716, 0.5, 0.0
      %v1869 = vsel %vm1717, 0.5, 0.0
      %v1870 = vsel %vm1718, 0.5, 0.0
      %v1871 = vsel %vm1719, 0.5, 0.0
      %v1872 = vsel %vm1720, 0.5, 0.0
      %v1873 = vsel %vm1721, 0.5, 0.0
      %v1874 = vsel %vm1722, 0.5, 0.0
      %v1875 = vsel %vm1723, 0.5, 0.0
      %v1876 = vsel %vm1724, 0.5, 0.0
      %v1877 = vsel %vm1725, 0.5, 0.0
      %v1878 = vsel %vm1726, 0.5, 0.0
      %v1879 = vsel %vm1727, 0.5, 0.0
      %v1880 = vsel %vm1728, 0.5, 0.0
      %v1881 = vsel %vm1729, 0.5, 0.0
      %v1882 = vsel %vm1730, 0.5, 0.0
      %v1883 = vsel %vm1731, 0.5, 0.0
      %v1884 = vsel %vm1732, 0.5, 0.0
      %v1885 = vsel %vm1733, 0.5, 0.0
      %v1886 = vsel %vm1734, 0.5, 0.0
      %v1887 = vsel %vm1735, 0.5, 0.0
      %v1888 = vsel %vm1736, 0.5, 0.0
      %v1889 = vsel %vm1737, 0.5, 0.0
      %v1890 = vsel %vm1738, 0.5, 0.0
      %v1891 = vsel %vm1739, 0.5, 0.0
      %v1892 = vsel %vm1740, 0.5, 0.0
      %v1893 = vsel %vm1741, 0.5, 0.0
      %v1894 = vsel %vm1742, 0.5, 0.0
      %v1895 = vsel %vm1743, 0.5, 0.0
      %v1896 = vsel %vm1744, 0.5, 0.0
      %v1897 = vsel %vm1745, 0.5, 0.0
      %v1898 = vsel %vm1746, 0.5, 0.0
      %v1899 = vsel %vm1747, 0.5, 0.0
      %v1900 = vsel %vm1748, 0.5, 0.0
      %v1901 = vsel %vm1749, 0.5, 0.0
      %v1902 = vsel %vm1750, 0.5, 0.0
      %v1903 = vsel %vm1751, 0.5, 0.0
      %v1904 = vsel %vm1752, 0.5, 0.0
      %v1905 = vsel %vm1753, 0.5, 0.0
      %v1906 = vsel %vm1754, 0.5, 0.0
      %v1907 = vsel %vm1755, 0.5, 0.0
      %v1908 = vsel %vm1756, 0.5, 0.0
      %v1909 = vsel %vm1757, 0.5, 0.0
      %v1910 = vsel %vm1758, 0.5, 0.0
      %v1911 = vsel %vm1455, 1.0, %v1759
      %v1912 = vsel %vm1456, 1.0, %v1760
      %v1913 = vsel %vm1457, 1.0, %v1761
      %v1914 = vsel %vm1458, 1.0, %v1762
      %v1915 = vsel %vm1459, 1.0, %v1763
      %v1916 = vsel %vm1460, 1.0, %v1764
      %v1917 = vsel %vm1461, 1.0, %v1765
      %v1918 = vsel %vm1462, 1.0, %v1766
      %v1919 = vsel %vm1463, 1.0, %v1767
      %v1920 = vsel %vm1464, 1.0, %v1768
      %v1921 = vsel %vm1465, 1.0, %v1769
      %v1922 = vsel %vm1466, 1.0, %v1770
      %v1923 = vsel %vm1467, 1.0, %v1771
      %v1924 = vsel %vm1468, 1.0, %v1772
      %v1925 = vsel %vm1469, 1.0, %v1773
      %v1926 = vsel %vm1470, 1.0, %v1774
      %v1927 = vsel %vm1471, 1.0, %v1775
      %v1928 = vsel %vm1472, 1.0, %v1776
      %v1929 = vsel %vm1473, 1.0, %v1777
      %v1930 = vsel %vm1474, 1.0, %v1778
      %v1931 = vsel %vm1475, 1.0, %v1779
      %v1932 = vsel %vm1476, 1.0, %v1780
      %v1933 = vsel %vm1477, 1.0, %v1781
      %v1934 = vsel %vm1478, 1.0, %v1782
      %v1935 = vsel %vm1479, 1.0, %v1783
      %v1936 = vsel %vm1480, 1.0, %v1784
      %v1937 = vsel %vm1481, 1.0, %v1785
      %v1938 = vsel %vm1482, 1.0, %v1786
      %v1939 = vsel %vm1483, 1.0, %v1787
      %v1940 = vsel %vm1484, 1.0, %v1788
      %v1941 = vsel %vm1485, 1.0, %v1789
      %v1942 = vsel %vm1486, 1.0, %v1790
      %v1943 = vsel %vm1487, 1.0, %v1791
      %v1944 = vsel %vm1488, 1.0, %v1792
      %v1945 = vsel %vm1489, 1.0, %v1793
      %v1946 = vsel %vm1490, 1.0, %v1794
      %v1947 = vsel %vm1491, 1.0, %v1795
      %v1948 = vsel %vm1492, 1.0, %v1796
      %v1949 = vsel %vm1493, 1.0, %v1797
      %v1950 = vsel %vm1494, 1.0, %v1798
      %v1951 = vsel %vm1495, 1.0, %v1799
      %v1952 = vsel %vm1496, 1.0, %v1800
      %v1953 = vsel %vm1497, 1.0, %v1801
      %v1954 = vsel %vm1498, 1.0, %v1802
      %v1955 = vsel %vm1499, 1.0, %v1803
      %v1956 = vsel %vm1500, 1.0, %v1804
      %v1957 = vsel %vm1501, 1.0, %v1805
      %v1958 = vsel %vm1502, 1.0, %v1806
      %v1959 = vsel %vm1503, 1.0, %v1807
      %v1960 = vsel %vm1504, 1.0, %v1808
      %v1961 = vsel %vm1505, 1.0, %v1809
      %v1962 = vsel %vm1506, 1.0, %v1810
      %v1963 = vsel %vm1507, 1.0, %v1811
      %v1964 = vsel %vm1508, 1.0, %v1812
      %v1965 = vsel %vm1509, 1.0, %v1813
      %v1966 = vsel %vm1510, 1.0, %v1814
      %v1967 = vsel %vm1511, 1.0, %v1815
      %v1968 = vsel %vm1512, 1.0, %v1816
      %v1969 = vsel %vm1513, 1.0, %v1817
      %v1970 = vsel %vm1514, 1.0, %v1818
      %v1971 = vsel %vm1515, 1.0, %v1819
      %v1972 = vsel %vm1516, 1.0, %v1820
      %v1973 = vsel %vm1517, 1.0, %v1821
      %v1974 = vsel %vm1518, 1.0, %v1822
      %v1975 = vsel %vm1519, 1.0, %v1823
      %v1976 = vsel %vm1520, 1.0, %v1824
      %v1977 = vsel %vm1521, 1.0, %v1825
      %v1978 = vsel %vm1522, 1.0, %v1826
      %v1979 = vsel %vm1523, 1.0, %v1827
      %v1980 = vsel %vm1524, 1.0, %v1828
      %v1981 = vsel %vm1525, 1.0, %v1829
      %v1982 = vsel %vm1526, 1.0, %v1830
      %v1983 = vsel %vm1527, 1.0, %v1831
      %v1984 = vsel %vm1528, 1.0, %v1832
      %v1985 = vsel %vm1529, 1.0, %v1833
      %v1986 = vsel %vm1530, 1.0, %v1834
      %v1987 = vsel %vm1531, 1.0, %v1835
      %v1988 = vsel %vm1532, 1.0, %v1836
      %v1989 = vsel %vm1533, 1.0, %v1837
      %v1990 = vsel %vm1534, 1.0, %v1838
      %v1991 = vsel %vm1535, 1.0, %v1839
      %v1992 = vsel %vm1536, 1.0, %v1840
      %v1993 = vsel %vm1537, 1.0, %v1841
      %v1994 = vsel %vm1538, 1.0, %v1842
      %v1995 = vsel %vm1539, 1.0, %v1843
      %v1996 = vsel %vm1540, 1.0, %v1844
      %v1997 = vsel %vm1541, 1.0, %v1845
      %v1998 = vsel %vm1542, 1.0, %v1846
      %v1999 = vsel %vm1543, 1.0, %v1847
      %v2000 = vsel %vm1544, 1.0, %v1848
      %v2001 = vsel %vm1545, 1.0, %v1849
      %v2002 = vsel %vm1546, 1.0, %v1850
      %v2003 = vsel %vm1547, 1.0, %v1851
      %v2004 = vsel %vm1548, 1.0, %v1852
      %v2005 = vsel %vm1549, 1.0, %v1853
      %v2006 = vsel %vm1550, 1.0, %v1854
      %v2007 = vsel %vm1551, 1.0, %v1855
      %v2008 = vsel %vm1552, 1.0, %v1856
      %v2009 = vsel %vm1553, 1.0, %v1857
      %v2010 = vsel %vm1554, 1.0, %v1858
      %v2011 = vsel %vm1555, 1.0, %v1859
      %v2012 = vsel %vm1556, 1.0, %v1860
      %v2013 = vsel %vm1557, 1.0, %v1861
      %v2014 = vsel %vm1558, 1.0, %v1862
      %v2015 = vsel %vm1559, 1.0, %v1863
      %v2016 = vsel %vm1560, 1.0, %v1864
      %v2017 = vsel %vm1561, 1.0, %v1865
      %v2018 = vsel %vm1562, 1.0, %v1866
      %v2019 = vsel %vm1563, 1.0, %v1867
      %v2020 = vsel %vm1564, 1.0, %v1868
      %v2021 = vsel %vm1565, 1.0, %v1869
      %v2022 = vsel %vm1566, 1.0, %v1870
      %v2023 = vsel %vm1567, 1.0, %v1871
      %v2024 = vsel %vm1568, 1.0, %v1872
      %v2025 = vsel %vm1569, 1.0, %v1873
      %v2026 = vsel %vm1570, 1.0, %v1874
      %v2027 = vsel %vm1571, 1.0, %v1875
      %v2028 = vsel %vm1572, 1.0, %v1876
      %v2029 = vsel %vm1573, 1.0, %v1877
      %v2030 = vsel %vm1574, 1.0, %v1878
      %v2031 = vsel %vm1575, 1.0, %v1879
      %v2032 = vsel %vm1576, 1.0, %v1880
      %v2033 = vsel %vm1577, 1.0, %v1881
      %v2034 = vsel %vm1578, 1.0, %v1882
      %v2035 = vsel %vm1579, 1.0, %v1883
      %v2036 = vsel %vm1580, 1.0, %v1884
      %v2037 = vsel %vm1581, 1.0, %v1885
      %v2038 = vsel %vm1582, 1.0, %v1886
      %v2039 = vsel %vm1583, 1.0, %v1887
      %v2040 = vsel %vm1584, 1.0, %v1888
      %v2041 = vsel %vm1585, 1.0, %v1889
      %v2042 = vsel %vm1586, 1.0, %v1890
      %v2043 = vsel %vm1587, 1.0, %v1891
      %v2044 = vsel %vm1588, 1.0, %v1892
      %v2045 = vsel %vm1589, 1.0, %v1893
      %v2046 = vsel %vm1590, 1.0, %v1894
      %v2047 = vsel %vm1591, 1.0, %v1895
      %v2048 = vsel %vm1592, 1.0, %v1896
      %v2049 = vsel %vm1593, 1.0, %v1897
      %v2050 = vsel %vm1594, 1.0, %v1898
      %v2051 = vsel %vm1595, 1.0, %v1899
      %v2052 = vsel %vm1596, 1.0, %v1900
      %v2053 = vsel %vm1597, 1.0, %v1901
      %v2054 = vsel %vm1598, 1.0, %v1902
      %v2055 = vsel %vm1599, 1.0, %v1903
      %v2056 = vsel %vm1600, 1.0, %v1904
      %v2057 = vsel %vm1601, 1.0, %v1905
      %v2058 = vsel %vm1602, 1.0, %v1906
      %v2059 = vsel %vm1603, 1.0, %v1907
      %v2060 = vsel %vm1604, 1.0, %v1908
      %v2061 = vsel %vm1605, 1.0, %v1909
      %v2062 = vsel %vm1606, 1.0, %v1910
      %v2063 = vadd.f32 %v1911, %v1912
      %v2064 = vadd.f32 %v2063, %v1913
      %v2065 = vadd.f32 %v2064, %v1914
      %2066 = vadd.xlane.f32.xlu0 %v2065
      %v2067 = vpop.xlane.xlu0 %2066
      %v2068 = vadd.f32 %v1915, %v1916
      %v2069 = vadd.f32 %v2068, %v1917
      %v2070 = vadd.f32 %v2069, %v1918
      %2071 = vadd.xlane.f32.xlu0 %v2070
      %v2072 = vpop.xlane.xlu0 %2071
      %v2073 = vadd.f32 %v1919, %v1920
      %v2074 = vadd.f32 %v2073, %v1921
      %v2075 = vadd.f32 %v2074, %v1922
      %2076 = vadd.xlane.f32.xlu0 %v2075
      %v2077 = vpop.xlane.xlu0 %2076
      %v2078 = vadd.f32 %v1923, %v1924
      %v2079 = vadd.f32 %v2078, %v1925
      %v2080 = vadd.f32 %v2079, %v1926
      %2081 = vadd.xlane.f32.xlu0 %v2080
      %v2082 = vpop.xlane.xlu0 %2081
      %v2083 = vadd.f32 %v1927, %v1928
      %v2084 = vadd.f32 %v2083, %v1929
      %v2085 = vadd.f32 %v2084, %v1930
      %2086 = vadd.xlane.f32.xlu0 %v2085
      %v2087 = vpop.xlane.xlu0 %2086
      %v2088 = vadd.f32 %v1931, %v1932
      %v2089 = vadd.f32 %v2088, %v1933
      %v2090 = vadd.f32 %v2089, %v1934
      %2091 = vadd.xlane.f32.xlu0 %v2090
      %v2092 = vpop.xlane.xlu0 %2091
      %v2093 = vadd.f32 %v1935, %v1936
      %v2094 = vadd.f32 %v2093, %v1937
      %v2095 = vadd.f32 %v2094, %v1938
      %2096 = vadd.xlane.f32.xlu0 %v2095
      %v2097 = vpop.xlane.xlu0 %2096
      %v2098 = vadd.f32 %v1939, %v1940
      %v2099 = vadd.f32 %v2098, %v1941
      %v2100 = vadd.f32 %v2099, %v1942
      %2101 = vadd.xlane.f32.xlu0 %v2100
      %v2102 = vpop.xlane.xlu0 %2101
      %v2103 = vadd.f32 %v1943, %v1944
      %v2104 = vadd.f32 %v2103, %v1945
      %v2105 = vadd.f32 %v2104, %v1946
      %2106 = vadd.xlane.f32.xlu0 %v2105
      %v2107 = vpop.xlane.xlu0 %2106
      %v2108 = vadd.f32 %v1947, %v1948
      %v2109 = vadd.f32 %v2108, %v1949
      %v2110 = vadd.f32 %v2109, %v1950
      %2111 = vadd.xlane.f32.xlu0 %v2110
      %v2112 = vpop.xlane.xlu0 %2111
      %v2113 = vadd.f32 %v1951, %v1952
      %v2114 = vadd.f32 %v2113, %v1953
      %v2115 = vadd.f32 %v2114, %v1954
      %2116 = vadd.xlane.f32.xlu0 %v2115
      %v2117 = vpop.xlane.xlu0 %2116
      %v2118 = vadd.f32 %v1955, %v1956
      %v2119 = vadd.f32 %v2118, %v1957
      %v2120 = vadd.f32 %v2119, %v1958
      %2121 = vadd.xlane.f32.xlu0 %v2120
      %v2122 = vpop.xlane.xlu0 %2121
      %v2123 = vadd.f32 %v1959, %v1960
      %v2124 = vadd.f32 %v2123, %v1961
      %v2125 = vadd.f32 %v2124, %v1962
      %2126 = vadd.xlane.f32.xlu0 %v2125
      %v2127 = vpop.xlane.xlu0 %2126
      %v2128 = vadd.f32 %v1963, %v1964
      %v2129 = vadd.f32 %v2128, %v1965
      %v2130 = vadd.f32 %v2129, %v1966
      %2131 = vadd.xlane.f32.xlu0 %v2130
      %v2132 = vpop.xlane.xlu0 %2131
      %v2133 = vadd.f32 %v1967, %v1968
      %v2134 = vadd.f32 %v2133, %v1969
      %v2135 = vadd.f32 %v2134, %v1970
      %2136 = vadd.xlane.f32.xlu0 %v2135
      %v2137 = vpop.xlane.xlu0 %2136
      %v2138 = vadd.f32 %v1971, %v1972
      %v2139 = vadd.f32 %v2138, %v1973
      %v2140 = vadd.f32 %v2139, %v1974
      %2141 = vadd.xlane.f32.xlu0 %v2140
      %v2142 = vpop.xlane.xlu0 %2141
      %v2143 = vadd.f32 %v1975, %v1976
      %v2144 = vadd.f32 %v2143, %v1977
      %v2145 = vadd.f32 %v2144, %v1978
      %2146 = vadd.xlane.f32.xlu0 %v2145
      %v2147 = vpop.xlane.xlu0 %2146
      %v2148 = vadd.f32 %v1979, %v1980
      %v2149 = vadd.f32 %v2148, %v1981
      %v2150 = vadd.f32 %v2149, %v1982
      %2151 = vadd.xlane.f32.xlu0 %v2150
      %v2152 = vpop.xlane.xlu0 %2151
      %v2153 = vadd.f32 %v1983, %v1984
      %v2154 = vadd.f32 %v2153, %v1985
      %v2155 = vadd.f32 %v2154, %v1986
      %2156 = vadd.xlane.f32.xlu0 %v2155
      %v2157 = vpop.xlane.xlu0 %2156
      %v2158 = vadd.f32 %v1987, %v1988
      %v2159 = vadd.f32 %v2158, %v1989
      %v2160 = vadd.f32 %v2159, %v1990
      %2161 = vadd.xlane.f32.xlu0 %v2160
      %v2162 = vpop.xlane.xlu0 %2161
      %v2163 = vadd.f32 %v1991, %v1992
      %v2164 = vadd.f32 %v2163, %v1993
      %v2165 = vadd.f32 %v2164, %v1994
      %2166 = vadd.xlane.f32.xlu0 %v2165
      %v2167 = vpop.xlane.xlu0 %2166
      %v2168 = vadd.f32 %v1995, %v1996
      %v2169 = vadd.f32 %v2168, %v1997
      %v2170 = vadd.f32 %v2169, %v1998
      %2171 = vadd.xlane.f32.xlu0 %v2170
      %v2172 = vpop.xlane.xlu0 %2171
      %v2173 = vadd.f32 %v1999, %v2000
      %v2174 = vadd.f32 %v2173, %v2001
      %v2175 = vadd.f32 %v2174, %v2002
      %2176 = vadd.xlane.f32.xlu0 %v2175
      %v2177 = vpop.xlane.xlu0 %2176
      %v2178 = vadd.f32 %v2003, %v2004
      %v2179 = vadd.f32 %v2178, %v2005
      %v2180 = vadd.f32 %v2179, %v2006
      %2181 = vadd.xlane.f32.xlu0 %v2180
      %v2182 = vpop.xlane.xlu0 %2181
      %v2183 = vadd.f32 %v2007, %v2008
      %v2184 = vadd.f32 %v2183, %v2009
      %v2185 = vadd.f32 %v2184, %v2010
      %2186 = vadd.xlane.f32.xlu0 %v2185
      %v2187 = vpop.xlane.xlu0 %2186
      %v2188 = vadd.f32 %v2011, %v2012
      %v2189 = vadd.f32 %v2188, %v2013
      %v2190 = vadd.f32 %v2189, %v2014
      %2191 = vadd.xlane.f32.xlu0 %v2190
      %v2192 = vpop.xlane.xlu0 %2191
      %v2193 = vadd.f32 %v2015, %v2016
      %v2194 = vadd.f32 %v2193, %v2017
      %v2195 = vadd.f32 %v2194, %v2018
      %2196 = vadd.xlane.f32.xlu0 %v2195
      %v2197 = vpop.xlane.xlu0 %2196
      %v2198 = vadd.f32 %v2019, %v2020
      %v2199 = vadd.f32 %v2198, %v2021
      %v2200 = vadd.f32 %v2199, %v2022
      %2201 = vadd.xlane.f32.xlu0 %v2200
      %v2202 = vpop.xlane.xlu0 %2201
      %v2203 = vadd.f32 %v2023, %v2024
      %v2204 = vadd.f32 %v2203, %v2025
      %v2205 = vadd.f32 %v2204, %v2026
      %2206 = vadd.xlane.f32.xlu0 %v2205
      %v2207 = vpop.xlane.xlu0 %2206
      %v2208 = vadd.f32 %v2027, %v2028
      %v2209 = vadd.f32 %v2208, %v2029
      %v2210 = vadd.f32 %v2209, %v2030
      %2211 = vadd.xlane.f32.xlu0 %v2210
      %v2212 = vpop.xlane.xlu0 %2211
      %v2213 = vadd.f32 %v2031, %v2032
      %v2214 = vadd.f32 %v2213, %v2033
      %v2215 = vadd.f32 %v2214, %v2034
      %2216 = vadd.xlane.f32.xlu0 %v2215
      %v2217 = vpop.xlane.xlu0 %2216
      %v2218 = vadd.f32 %v2035, %v2036
      %v2219 = vadd.f32 %v2218, %v2037
      %v2220 = vadd.f32 %v2219, %v2038
      %2221 = vadd.xlane.f32.xlu0 %v2220
      %v2222 = vpop.xlane.xlu0 %2221
      %v2223 = vadd.f32 %v2039, %v2040
      %v2224 = vadd.f32 %v2223, %v2041
      %v2225 = vadd.f32 %v2224, %v2042
      %2226 = vadd.xlane.f32.xlu0 %v2225
      %v2227 = vpop.xlane.xlu0 %2226
      %v2228 = vadd.f32 %v2043, %v2044
      %v2229 = vadd.f32 %v2228, %v2045
      %v2230 = vadd.f32 %v2229, %v2046
      %2231 = vadd.xlane.f32.xlu0 %v2230
      %v2232 = vpop.xlane.xlu0 %2231
      %v2233 = vadd.f32 %v2047, %v2048
      %v2234 = vadd.f32 %v2233, %v2049
      %v2235 = vadd.f32 %v2234, %v2050
      %2236 = vadd.xlane.f32.xlu0 %v2235
      %v2237 = vpop.xlane.xlu0 %2236
      %v2238 = vadd.f32 %v2051, %v2052
      %v2239 = vadd.f32 %v2238, %v2053
      %v2240 = vadd.f32 %v2239, %v2054
      %2241 = vadd.xlane.f32.xlu0 %v2240
      %v2242 = vpop.xlane.xlu0 %2241
      %v2243 = vadd.f32 %v2055, %v2056
      %v2244 = vadd.f32 %v2243, %v2057
      %v2245 = vadd.f32 %v2244, %v2058
      %2246 = vadd.xlane.f32.xlu0 %v2245
      %v2247 = vpop.xlane.xlu0 %2246
      %v2248 = vadd.f32 %v2059, %v2060
      %v2249 = vadd.f32 %v2248, %v2061
      %v2250 = vadd.f32 %v2249, %v2062
      %2251 = vadd.xlane.f32.xlu0 %v2250
      %v2252 = vpop.xlane.xlu0 %2251
      %v2253 = vld [vmem:[#allocation2] sm:$0xff]
      %v2254 = vld [vmem:[#allocation2 + $0x8] sm:$0xff]
      %v2255 = vld [vmem:[#allocation2 + $0x10] sm:$0xff]
      %v2256 = vld [vmem:[#allocation2 + $0x18] sm:$0xff]
      %v2257 = vld [vmem:[#allocation2 + $0x20] sm:$0xff]
      %v2258 = vld [vmem:[#allocation2 + $0x28] sm:$0xff]
      %v2259 = vld [vmem:[#allocation2 + $0x30] sm:$0xff]
      %v2260 = vld [vmem:[#allocation2 + $0x38] sm:$0xff]
      %v2261 = vld [vmem:[#allocation2 + $0x40] sm:$0xff]
      %v2262 = vld [vmem:[#allocation2 + $0x48] sm:$0xff]
      %v2263 = vld [vmem:[#allocation2 + $0x50] sm:$0xff]
      %v2264 = vld [vmem:[#allocation2 + $0x58] sm:$0xff]
      %v2265 = vld [vmem:[#allocation2 + $0x60] sm:$0xff]
      %v2266 = vld [vmem:[#allocation2 + $0x68] sm:$0xff]
      %v2267 = vld [vmem:[#allocation2 + $0x70] sm:$0xff]
      %v2268 = vld [vmem:[#allocation2 + $0x78] sm:$0xff]
      %v2269 = vld [vmem:[#allocation2 + $0x80] sm:$0xff]
      %v2270 = vld [vmem:[#allocation2 + $0x88] sm:$0xff]
      %v2271 = vld [vmem:[#allocation2 + $0x90] sm:$0xff]
      %v2272 = vld [vmem:[#allocation2 + $0x98] sm:$0xff]
      %v2273 = vld [vmem:[#allocation2 + $0xa0] sm:$0xff]
      %v2274 = vld [vmem:[#allocation2 + $0xa8] sm:$0xff]
      %v2275 = vld [vmem:[#allocation2 + $0xb0] sm:$0xff]
      %v2276 = vld [vmem:[#allocation2 + $0xb8] sm:$0xff]
      %v2277 = vld [vmem:[#allocation2 + $0xc0] sm:$0xff]
      %v2278 = vld [vmem:[#allocation2 + $0xc8] sm:$0xff]
      %v2279 = vld [vmem:[#allocation2 + $0xd0] sm:$0xff]
      %v2280 = vld [vmem:[#allocation2 + $0xd8] sm:$0xff]
      %v2281 = vld [vmem:[#allocation2 + $0xe0] sm:$0xff]
      %v2282 = vld [vmem:[#allocation2 + $0xe8] sm:$0xff]
      %v2283 = vld [vmem:[#allocation2 + $0xf0] sm:$0xff]
      %v2284 = vld [vmem:[#allocation2 + $0xf8] sm:$0xff]
      %v2285 = vld [vmem:[#allocation2 + $0x100] sm:$0xff]
      %v2286 = vld [vmem:[#allocation2 + $0x108] sm:$0xff]
      %v2287 = vld [vmem:[#allocation2 + $0x110] sm:$0xff]
      %v2288 = vld [vmem:[#allocation2 + $0x118] sm:$0xff]
      %v2289 = vld [vmem:[#allocation2 + $0x120] sm:$0xff]
      %v2290 = vld [vmem:[#allocation2 + $0x128] sm:$0xff]
      %v2291 = vadd.f32 %v2253, %v2067
      %v2292 = vadd.f32 %v2254, %v2072
      %v2293 = vadd.f32 %v2255, %v2077
      %v2294 = vadd.f32 %v2256, %v2082
      %v2295 = vadd.f32 %v2257, %v2087
      %v2296 = vadd.f32 %v2258, %v2092
      %v2297 = vadd.f32 %v2259, %v2097
      %v2298 = vadd.f32 %v2260, %v2102
      %v2299 = vadd.f32 %v2261, %v2107
      %v2300 = vadd.f32 %v2262, %v2112
      %v2301 = vadd.f32 %v2263, %v2117
      %v2302 = vadd.f32 %v2264, %v2122
      %v2303 = vadd.f32 %v2265, %v2127
      %v2304 = vadd.f32 %v2266, %v2132
      %v2305 = vadd.f32 %v2267, %v2137
      %v2306 = vadd.f32 %v2268, %v2142
      %v2307 = vadd.f32 %v2269, %v2147
      %v2308 = vadd.f32 %v2270, %v2152
      %v2309 = vadd.f32 %v2271, %v2157
      %v2310 = vadd.f32 %v2272, %v2162
      %v2311 = vadd.f32 %v2273, %v2167
      %v2312 = vadd.f32 %v2274, %v2172
      %v2313 = vadd.f32 %v2275, %v2177
      %v2314 = vadd.f32 %v2276, %v2182
      %v2315 = vadd.f32 %v2277, %v2187
      %v2316 = vadd.f32 %v2278, %v2192
      %v2317 = vadd.f32 %v2279, %v2197
      %v2318 = vadd.f32 %v2280, %v2202
      %v2319 = vadd.f32 %v2281, %v2207
      %v2320 = vadd.f32 %v2282, %v2212
      %v2321 = vadd.f32 %v2283, %v2217
      %v2322 = vadd.f32 %v2284, %v2222
      %v2323 = vadd.f32 %v2285, %v2227
      %v2324 = vadd.f32 %v2286, %v2232
      %v2325 = vadd.f32 %v2287, %v2237
      %v2326 = vadd.f32 %v2288, %v2242
      %v2327 = vadd.f32 %v2289, %v2247
      %v2328 = vadd.f32 %v2290, %v2252
      %2329 = vst.msk [vmem:[#allocation2] sm:$0xff] %vm1394, %v2291
      %2330 = vst.msk [vmem:[#allocation2 + $0x8] sm:$0xff] %vm1394, %v2292
      %2331 = vst.msk [vmem:[#allocation2 + $0x10] sm:$0xff] %vm1394, %v2293
      %2332 = vst.msk [vmem:[#allocation2 + $0x18] sm:$0xff] %vm1394, %v2294
      %2333 = vst.msk [vmem:[#allocation2 + $0x20] sm:$0xff] %vm1394, %v2295
      %2334 = vst.msk [vmem:[#allocation2 + $0x28] sm:$0xff] %vm1394, %v2296
      %2335 = vst.msk [vmem:[#allocation2 + $0x30] sm:$0xff] %vm1394, %v2297
      %2336 = vst.msk [vmem:[#allocation2 + $0x38] sm:$0xff] %vm1394, %v2298
      %2337 = vst.msk [vmem:[#allocation2 + $0x40] sm:$0xff] %vm1394, %v2299
      %2338 = vst.msk [vmem:[#allocation2 + $0x48] sm:$0xff] %vm1394, %v2300
      %2339 = vst.msk [vmem:[#allocation2 + $0x50] sm:$0xff] %vm1394, %v2301
      %2340 = vst.msk [vmem:[#allocation2 + $0x58] sm:$0xff] %vm1394, %v2302
      %2341 = vst.msk [vmem:[#allocation2 + $0x60] sm:$0xff] %vm1394, %v2303
      %2342 = vst.msk [vmem:[#allocation2 + $0x68] sm:$0xff] %vm1394, %v2304
      %2343 = vst.msk [vmem:[#allocation2 + $0x70] sm:$0xff] %vm1394, %v2305
      %2344 = vst.msk [vmem:[#allocation2 + $0x78] sm:$0xff] %vm1394, %v2306
      %2345 = vst.msk [vmem:[#allocation2 + $0x80] sm:$0xff] %vm1394, %v2307
      %2346 = vst.msk [vmem:[#allocation2 + $0x88] sm:$0xff] %vm1394, %v2308
      %2347 = vst.msk [vmem:[#allocation2 + $0x90] sm:$0xff] %vm1394, %v2309
      %2348 = vst.msk [vmem:[#allocation2 + $0x98] sm:$0xff] %vm1394, %v2310
      %2349 = vst.msk [vmem:[#allocation2 + $0xa0] sm:$0xff] %vm1394, %v2311
      %2350 = vst.msk [vmem:[#allocation2 + $0xa8] sm:$0xff] %vm1394, %v2312
      %2351 = vst.msk [vmem:[#allocation2 + $0xb0] sm:$0xff] %vm1394, %v2313
      %2352 = vst.msk [vmem:[#allocation2 + $0xb8] sm:$0xff] %vm1394, %v2314
      %2353 = vst.msk [vmem:[#allocation2 + $0xc0] sm:$0xff] %vm1394, %v2315
      %2354 = vst.msk [vmem:[#allocation2 + $0xc8] sm:$0xff] %vm1394, %v2316
      %2355 = vst.msk [vmem:[#allocation2 + $0xd0] sm:$0xff] %vm1394, %v2317
      %2356 = vst.msk [vmem:[#allocation2 + $0xd8] sm:$0xff] %vm1394, %v2318
      %2357 = vst.msk [vmem:[#allocation2 + $0xe0] sm:$0xff] %vm1394, %v2319
      %2358 = vst.msk [vmem:[#allocation2 + $0xe8] sm:$0xff] %vm1394, %v2320
      %2359 = vst.msk [vmem:[#allocation2 + $0xf0] sm:$0xff] %vm1394, %v2321
      %2360 = vst.msk [vmem:[#allocation2 + $0xf8] sm:$0xff] %vm1394, %v2322
      %2361 = vst.msk [vmem:[#allocation2 + $0x100] sm:$0xff] %vm1394, %v2323
      %2362 = vst.msk [vmem:[#allocation2 + $0x108] sm:$0xff] %vm1394, %v2324
      %2363 = vst.msk [vmem:[#allocation2 + $0x110] sm:$0xff] %vm1394, %v2325
      %2364 = vst.msk [vmem:[#allocation2 + $0x118] sm:$0xff] %vm1394, %v2326
      %2365 = vst.msk [vmem:[#allocation2 + $0x120] sm:$0xff] %vm1394, %v2327
      %2366 = vst.msk [vmem:[#allocation2 + $0x128] sm:$0xff] %vm1394, %v2328
      // Predicated region
      $region37: #{tpu_custom_call.1} parent=31 // pred_check
        %p2367 = pneg %p227
      $region38: #{tpu_custom_call.1} parent=31 // pred_check_branch
        %2369 = sbr.rel (%p2367) target = $region40
      $region39: #{tpu_custom_call.1} parent=31 // pred_region
        %v2370 = vld [vmem:[%s208] sm:$0xff]
        %v2371 = vld [vmem:[%s208 + $0x8] sm:$0xff]
        %v2372 = vld [vmem:[%s208 + $0x10] sm:$0xff]
        %v2373 = vld [vmem:[%s208 + $0x18] sm:$0xff]
        %v2374 = vld [vmem:[%s208 + $0x20] sm:$0xff]
        %v2375 = vld [vmem:[%s208 + $0x28] sm:$0xff]
        %v2376 = vld [vmem:[%s208 + $0x30] sm:$0xff]
        %v2377 = vld [vmem:[%s208 + $0x38] sm:$0xff]
        %v2378 = vld [vmem:[%s208 + $0x40] sm:$0xff]
        %v2379 = vld [vmem:[%s208 + $0x48] sm:$0xff]
        %v2380 = vld [vmem:[%s208 + $0x50] sm:$0xff]
        %v2381 = vld [vmem:[%s208 + $0x58] sm:$0xff]
        %v2382 = vld [vmem:[%s208 + $0x60] sm:$0xff]
        %v2383 = vld [vmem:[%s208 + $0x68] sm:$0xff]
        %v2384 = vld [vmem:[%s208 + $0x70] sm:$0xff]
        %v2385 = vld [vmem:[%s208 + $0x78] sm:$0xff]
        %v2386 = vld [vmem:[%s208 + $0x80] sm:$0xff]
        %v2387 = vld [vmem:[%s208 + $0x88] sm:$0xff]
        %v2388 = vld [vmem:[%s208 + $0x90] sm:$0xff]
        %v2389 = vld [vmem:[%s208 + $0x98] sm:$0xff]
        %v2390 = vld [vmem:[%s208 + $0xa0] sm:$0xff]
        %v2391 = vld [vmem:[%s208 + $0xa8] sm:$0xff]
        %v2392 = vld [vmem:[%s208 + $0xb0] sm:$0xff]
        %v2393 = vld [vmem:[%s208 + $0xb8] sm:$0xff]
        %v2394 = vld [vmem:[%s208 + $0xc0] sm:$0xff]
        %v2395 = vld [vmem:[%s208 + $0xc8] sm:$0xff]
        %v2396 = vld [vmem:[%s208 + $0xd0] sm:$0xff]
        %v2397 = vld [vmem:[%s208 + $0xd8] sm:$0xff]
        %v2398 = vld [vmem:[%s208 + $0xe0] sm:$0xff]
        %v2399 = vld [vmem:[%s208 + $0xe8] sm:$0xff]
        %v2400 = vld [vmem:[%s208 + $0xf0] sm:$0xff]
        %v2401 = vld [vmem:[%s208 + $0xf8] sm:$0xff]
        %v2402 = vld [vmem:[%s208 + $0x100] sm:$0xff]
        %v2403 = vld [vmem:[%s208 + $0x108] sm:$0xff]
        %v2404 = vld [vmem:[%s208 + $0x110] sm:$0xff]
        %v2405 = vld [vmem:[%s208 + $0x118] sm:$0xff]
        %v2406 = vld [vmem:[%s208 + $0x120] sm:$0xff]
        %v2407 = vld [vmem:[%s208 + $0x128] sm:$0xff]
        %v2408 = vld [vmem:[#allocation2] sm:$0xff]
        %v2409 = vld [vmem:[#allocation2 + $0x8] sm:$0xff]
        %v2410 = vld [vmem:[#allocation2 + $0x10] sm:$0xff]
        %v2411 = vld [vmem:[#allocation2 + $0x18] sm:$0xff]
        %v2412 = vld [vmem:[#allocation2 + $0x20] sm:$0xff]
        %v2413 = vld [vmem:[#allocation2 + $0x28] sm:$0xff]
        %v2414 = vld [vmem:[#allocation2 + $0x30] sm:$0xff]
        %v2415 = vld [vmem:[#allocation2 + $0x38] sm:$0xff]
        %v2416 = vld [vmem:[#allocation2 + $0x40] sm:$0xff]
        %v2417 = vld [vmem:[#allocation2 + $0x48] sm:$0xff]
        %v2418 = vld [vmem:[#allocation2 + $0x50] sm:$0xff]
        %v2419 = vld [vmem:[#allocation2 + $0x58] sm:$0xff]
        %v2420 = vld [vmem:[#allocation2 + $0x60] sm:$0xff]
        %v2421 = vld [vmem:[#allocation2 + $0x68] sm:$0xff]
        %v2422 = vld [vmem:[#allocation2 + $0x70] sm:$0xff]
        %v2423 = vld [vmem:[#allocation2 + $0x78] sm:$0xff]
        %v2424 = vld [vmem:[#allocation2 + $0x80] sm:$0xff]
        %v2425 = vld [vmem:[#allocation2 + $0x88] sm:$0xff]
        %v2426 = vld [vmem:[#allocation2 + $0x90] sm:$0xff]
        %v2427 = vld [vmem:[#allocation2 + $0x98] sm:$0xff]
        %v2428 = vld [vmem:[#allocation2 + $0xa0] sm:$0xff]
        %v2429 = vld [vmem:[#allocation2 + $0xa8] sm:$0xff]
        %v2430 = vld [vmem:[#allocation2 + $0xb0] sm:$0xff]
        %v2431 = vld [vmem:[#allocation2 + $0xb8] sm:$0xff]
        %v2432 = vld [vmem:[#allocation2 + $0xc0] sm:$0xff]
        %v2433 = vld [vmem:[#allocation2 + $0xc8] sm:$0xff]
        %v2434 = vld [vmem:[#allocation2 + $0xd0] sm:$0xff]
        %v2435 = vld [vmem:[#allocation2 + $0xd8] sm:$0xff]
        %v2436 = vld [vmem:[#allocation2 + $0xe0] sm:$0xff]
        %v2437 = vld [vmem:[#allocation2 + $0xe8] sm:$0xff]
        %v2438 = vld [vmem:[#allocation2 + $0xf0] sm:$0xff]
        %v2439 = vld [vmem:[#allocation2 + $0xf8] sm:$0xff]
        %v2440 = vld [vmem:[#allocation2 + $0x100] sm:$0xff]
        %v2441 = vld [vmem:[#allocation2 + $0x108] sm:$0xff]
        %v2442 = vld [vmem:[#allocation2 + $0x110] sm:$0xff]
        %v2443 = vld [vmem:[#allocation2 + $0x118] sm:$0xff]
        %v2444 = vld [vmem:[#allocation2 + $0x120] sm:$0xff]
        %v2445 = vld [vmem:[#allocation2 + $0x128] sm:$0xff]
        %v2446 = vmul.f32 %v2370, %v2408
        %v2447 = vmul.f32 %v2371, %v2409
        %v2448 = vmul.f32 %v2372, %v2410
        %v2449 = vmul.f32 %v2373, %v2411
        %v2450 = vmul.f32 %v2374, %v2412
        %v2451 = vmul.f32 %v2375, %v2413
        %v2452 = vmul.f32 %v2376, %v2414
        %v2453 = vmul.f32 %v2377, %v2415
        %v2454 = vmul.f32 %v2378, %v2416
        %v2455 = vmul.f32 %v2379, %v2417
        %v2456 = vmul.f32 %v2380, %v2418
        %v2457 = vmul.f32 %v2381, %v2419
        %v2458 = vmul.f32 %v2382, %v2420
        %v2459 = vmul.f32 %v2383, %v2421
        %v2460 = vmul.f32 %v2384, %v2422
        %v2461 = vmul.f32 %v2385, %v2423
        %v2462 = vmul.f32 %v2386, %v2424
        %v2463 = vmul.f32 %v2387, %v2425
        %v2464 = vmul.f32 %v2388, %v2426
        %v2465 = vmul.f32 %v2389, %v2427
        %v2466 = vmul.f32 %v2390, %v2428
        %v2467 = vmul.f32 %v2391, %v2429
        %v2468 = vmul.f32 %v2392, %v2430
        %v2469 = vmul.f32 %v2393, %v2431
        %v2470 = vmul.f32 %v2394, %v2432
        %v2471 = vmul.f32 %v2395, %v2433
        %v2472 = vmul.f32 %v2396, %v2434
        %v2473 = vmul.f32 %v2397, %v2435
        %v2474 = vmul.f32 %v2398, %v2436
        %v2475 = vmul.f32 %v2399, %v2437
        %v2476 = vmul.f32 %v2400, %v2438
        %v2477 = vmul.f32 %v2401, %v2439
        %v2478 = vmul.f32 %v2402, %v2440
        %v2479 = vmul.f32 %v2403, %v2441
        %v2480 = vmul.f32 %v2404, %v2442
        %v2481 = vmul.f32 %v2405, %v2443
        %v2482 = vmul.f32 %v2406, %v2444
        %v2483 = vmul.f32 %v2407, %v2445
        %2484 = vst.msk [vmem:[%s225] sm:$0xff] %vm1394, %v2446
        %2485 = vst.msk [vmem:[%s225 + $0x8] sm:$0xff] %vm1394, %v2447
        %2486 = vst.msk [vmem:[%s225 + $0x10] sm:$0xff] %vm1394, %v2448
        %2487 = vst.msk [vmem:[%s225 + $0x18] sm:$0xff] %vm1394, %v2449
        %2488 = vst.msk [vmem:[%s225 + $0x20] sm:$0xff] %vm1394, %v2450
        %2489 = vst.msk [vmem:[%s225 + $0x28] sm:$0xff] %vm1394, %v2451
        %2490 = vst.msk [vmem:[%s225 + $0x30] sm:$0xff] %vm1394, %v2452
        %2491 = vst.msk [vmem:[%s225 + $0x38] sm:$0xff] %vm1394, %v2453
        %2492 = vst.msk [vmem:[%s225 + $0x40] sm:$0xff] %vm1394, %v2454
        %2493 = vst.msk [vmem:[%s225 + $0x48] sm:$0xff] %vm1394, %v2455
        %2494 = vst.msk [vmem:[%s225 + $0x50] sm:$0xff] %vm1394, %v2456
        %2495 = vst.msk [vmem:[%s225 + $0x58] sm:$0xff] %vm1394, %v2457
        %2496 = vst.msk [vmem:[%s225 + $0x60] sm:$0xff] %vm1394, %v2458
        %2497 = vst.msk [vmem:[%s225 + $0x68] sm:$0xff] %vm1394, %v2459
        %2498 = vst.msk [vmem:[%s225 + $0x70] sm:$0xff] %vm1394, %v2460
        %2499 = vst.msk [vmem:[%s225 + $0x78] sm:$0xff] %vm1394, %v2461
        %2500 = vst.msk [vmem:[%s225 + $0x80] sm:$0xff] %vm1394, %v2462
        %2501 = vst.msk [vmem:[%s225 + $0x88] sm:$0xff] %vm1394, %v2463
        %2502 = vst.msk [vmem:[%s225 + $0x90] sm:$0xff] %vm1394, %v2464
        %2503 = vst.msk [vmem:[%s225 + $0x98] sm:$0xff] %vm1394, %v2465
        %2504 = vst.msk [vmem:[%s225 + $0xa0] sm:$0xff] %vm1394, %v2466
        %2505 = vst.msk [vmem:[%s225 + $0xa8] sm:$0xff] %vm1394, %v2467
        %2506 = vst.msk [vmem:[%s225 + $0xb0] sm:$0xff] %vm1394, %v2468
        %2507 = vst.msk [vmem:[%s225 + $0xb8] sm:$0xff] %vm1394, %v2469
        %2508 = vst.msk [vmem:[%s225 + $0xc0] sm:$0xff] %vm1394, %v2470
        %2509 = vst.msk [vmem:[%s225 + $0xc8] sm:$0xff] %vm1394, %v2471
        %2510 = vst.msk [vmem:[%s225 + $0xd0] sm:$0xff] %vm1394, %v2472
        %2511 = vst.msk [vmem:[%s225 + $0xd8] sm:$0xff] %vm1394, %v2473
        %2512 = vst.msk [vmem:[%s225 + $0xe0] sm:$0xff] %vm1394, %v2474
        %2513 = vst.msk [vmem:[%s225 + $0xe8] sm:$0xff] %vm1394, %v2475
        %2514 = vst.msk [vmem:[%s225 + $0xf0] sm:$0xff] %vm1394, %v2476
        %2515 = vst.msk [vmem:[%s225 + $0xf8] sm:$0xff] %vm1394, %v2477
        %2516 = vst.msk [vmem:[%s225 + $0x100] sm:$0xff] %vm1394, %v2478
        %2517 = vst.msk [vmem:[%s225 + $0x108] sm:$0xff] %vm1394, %v2479
        %2518 = vst.msk [vmem:[%s225 + $0x110] sm:$0xff] %vm1394, %v2480
        %2519 = vst.msk [vmem:[%s225 + $0x118] sm:$0xff] %vm1394, %v2481
        %2520 = vst.msk [vmem:[%s225 + $0x120] sm:$0xff] %vm1394, %v2482
        %2521 = vst.msk [vmem:[%s225 + $0x128] sm:$0xff] %vm1394, %v2483
      $region40: #{tpu_custom_call.1} parent=31 // pred_fallthru
        _
      %s2522 = smul.u32 38, %s18
      %p2523 = scmp.lt.s32.totalorder %s2522, 75
      %s2524 = scalar_select %p2523, %s2522, 75
      %s2525 = smul.addr %s2524, 8
      %s2526 = scalar_lea.vmem %s3, %s2525
      // Predicated region
      $region41: #{tpu_custom_call.1} parent=31 // pred_check
        %p2527 = pneg %p122
      $region42: #{tpu_custom_call.1} parent=31 // pred_check_branch
        %2529 = sbr.rel (%p2527) target = $region44
      $region43: #{tpu_custom_call.1} parent=31 // pred_region
        %s2530 = smul.u32 38, %s18
      $region44: #{tpu_custom_call.1} parent=31 // pred_fallthru
        _
    $region32: #{tpu_custom_call.1} parent=5 // pred_fallthru
      _
    %p2531 = scmp.le.s32.totalorder 2, %s9
    // Predicated region
    $region45: #{tpu_custom_call.1} parent=5 // pred_check
      %p2532 = pneg %p2531
    $region46: #{tpu_custom_call.1} parent=5 // pred_check_branch
      %2534 = sbr.rel (%p2532) target = $region48
    $region47: #{tpu_custom_call.1} parent=5 // pred_region
      %s2535 = ssub.s32 %s9, 2
      // Predicated region
      $region49: #{tpu_custom_call.1} parent=47 // pred_check
        %p2536 = pneg %p128
      $region50: #{tpu_custom_call.1} parent=47 // pred_check_branch
        %2538 = sbr.rel (%p2536) target = $region52
      $region51: #{tpu_custom_call.1} parent=47 // pred_region
        %s2539 = smul.u32 38, %s20
        %p2540 = scmp.lt.s32.totalorder %s2539, 75
        %s2541 = scalar_select %p2540, %s2539, 75
        %s2542 = smul.addr %s2541, 8
        %s2543 = scalar_lea.vmem %s3, %s2542
      $region52: #{tpu_custom_call.1} parent=47 // pred_fallthru
        _
    $region48: #{tpu_custom_call.1} parent=5 // pred_fallthru
      _
  $region6: #{tpu_custom_call.1} parent=0 // loop_footer
    %s13 = sadd.s32 1, %s9
  $region7: #{tpu_custom_call.1} parent=0 // loop_footer_branch
    %8 = sbr.rel target = $region3
  $region8: #{tpu_custom_call.1} parent=0 // loop_exit
    _

</llo_original>
